<compile_context>
chip_gen: v7x
topology: tpu7x:2x2x1
jax: 0.10.0
libtpu: 0.0.40
codegen_flags: <defaults>
</compile_context>

<pallas_src>
import functools

import jax
import jax.numpy as jnp
from jax import lax
from jax.experimental import pallas as pl
from jax.experimental.pallas import tpu as pltpu


def encoder_kernel(x_ref, h0_ref, c0_ref,
                   wih_ref, whh_ref, b_ref,
                   w1_ref, b1_ref, wz_ref, bz_ref,
                   emb_ref, hn_ref, cn_ref,
                   h_all_sc, *, seq_len):
    SB, _ = x_ref.shape
    B = SB // seq_len
    H = h0_ref.shape[-1]

    # ---- Hoisted input projection for ALL timesteps (one matmul). ----------
    # b_ref already holds bih + bhh folded together (wrapper-side).
    xg = (jnp.dot(x_ref[...], wih_ref[...], preferred_element_type=jnp.float32)
          + b_ref[...])                                            # (S*B, 4H)

    whh = whh_ref[...]                                             # (H, 4H)
    h = h0_ref[...].astype(jnp.float32)                            # (B, H)
    c = c0_ref[...].astype(jnp.float32)                            # (B, H)

    # ---- Serial time recurrence (fully unrolled, S is small & static). -----
    # PyTorch LSTM gate order: [i, f, g, o] along the 4H axis.
    for t in range(seq_len):
        gates = xg[t * B:(t + 1) * B, :] + jnp.dot(
            h, whh, preferred_element_type=jnp.float32)            # (B, 4H)
        i_g = jax.nn.sigmoid(gates[:, 0:H])
        f_g = jax.nn.sigmoid(gates[:, H:2 * H])
        g_g = jnp.tanh(gates[:, 2 * H:3 * H])
        o_g = jax.nn.sigmoid(gates[:, 3 * H:4 * H])
        c = f_g * c + i_g * g_g
        h = o_g * jnp.tanh(c)
        h_all_sc[t * B:(t + 1) * B, :] = h                         # stash h_t

    # ---- fc1 + relu, then m_z — batched over all S*B rows, stored once. ----
    hs = h_all_sc[...]                                             # (S*B, H)
    z = jnp.maximum(
        jnp.dot(hs, w1_ref[...], preferred_element_type=jnp.float32)
        + b1_ref[...], 0.0)
    emb = jnp.dot(z, wz_ref[...], preferred_element_type=jnp.float32) + bz_ref[...]

    emb_ref[...] = emb.astype(emb_ref.dtype)                       # (S*B, O)
    hn_ref[...] = h.astype(hn_ref.dtype)                           # (B, H)
    cn_ref[...] = c.astype(cn_ref.dtype)                           # (B, H)


def encoder_forward(x, hidden, params):
    """x: (S, B, D) or (B, D); hidden: (h0, c0) each (1, B, H)."""
    if x.ndim == 2:
        x = x[None]                        # matches x.unsqueeze(0)
    h0, c0 = hidden
    S, B, D = x.shape
    H = h0.shape[-1]
    O = params["wz"].shape[1]

    # Pre-transposed weights so the kernel does plain row-major matmuls:
    #   wih: (D, 4H), whh: (H, 4H), w1: (H, H), wz: (H, O); biases (1, n).
    bias = params["bih"] + params["bhh"]   # fold the two LSTM biases
    x2 = x.reshape(S * B, D)               # lane/sublane friendly 2-D slab

    full = lambda shape: pl.BlockSpec(shape, lambda i: (0,) * len(shape))

    emb2, h_n, c_n = pl.pallas_call(
        functools.partial(encoder_kernel, seq_len=S),
        out_shape=(
            jax.ShapeDtypeStruct((S * B, O), x.dtype),
            jax.ShapeDtypeStruct((B, H), x.dtype),
            jax.ShapeDtypeStruct((B, H), x.dtype),
        ),
        grid=(1,),                                     # single invocation
        in_specs=[
            full((S * B, D)),                          # x (all timesteps)
            full((B, H)),                              # h0
            full((B, H)),                              # c0
            full((D, 4 * H)),                          # wih
            full((H, 4 * H)),                          # whh
            full((1, 4 * H)),                          # bih + bhh (folded)
            full((H, H)),                              # w1
            full((1, H)),                              # b1
            full((H, O)),                              # wz
            full((1, O)),                              # bz
        ],
        out_specs=(
            full((S * B, O)),                          # embedding (lane-dense slab)
            full((B, H)),                              # h_n
            full((B, H)),                              # c_n
        ),
        scratch_shapes=[
            pltpu.VMEM((S * B, H), jnp.float32),       # all h_t for batched fc1/m_z
        ],
        compiler_params=pltpu.CompilerParams(
            dimension_semantics=("arbitrary",)),       # recurrence is sequential
    )(x2, h0[0], c0[0], params["wih"], params["whh"], bias,
      params["w1"], params["b1"], params["wz"], params["bz"])

    emb = emb2.reshape(S, B, O)
    return emb, (h_n[None], c_n[None])


def encoder_reference(x, hidden, params):
    """Pure-JAX reference (mirrors PyTorch nn.LSTM + Linear semantics)."""
    if x.ndim == 2:
        x = x[None]
    h0, c0 = hidden
    H = h0.shape[-1]

    def step(carry, x_t):
        h, c = carry
        gates = (x_t @ params["wih"] + h @ params["whh"]
                 + params["bih"][0] + params["bhh"][0])
        i = jax.nn.sigmoid(gates[:, 0:H])
        f = jax.nn.sigmoid(gates[:, H:2 * H])
        g = jnp.tanh(gates[:, 2 * H:3 * H])
        o = jax.nn.sigmoid(gates[:, 3 * H:4 * H])
        c = f * c + i * g
        h = o * jnp.tanh(c)
        return (h, c), h

    (h_n, c_n), hs = lax.scan(step, (h0[0], c0[0]), x)
    z = jnp.maximum(hs @ params["w1"] + params["b1"][0], 0.0)
    emb = z @ params["wz"] + params["bz"][0]
    return emb, (h_n[None], c_n[None])


def init_params(key, input_dim, hidden_dim, output_dim):
    ks = jax.random.split(key, 8)
    s = 1.0 / jnp.sqrt(hidden_dim)
    u = lambda k, shape: jax.random.uniform(k, shape, jnp.float32, -s, s)
    return {
        "wih": u(ks[0], (input_dim, 4 * hidden_dim)),
        "whh": u(ks[1], (hidden_dim, 4 * hidden_dim)),
        "bih": u(ks[2], (1, 4 * hidden_dim)),
        "bhh": u(ks[3], (1, 4 * hidden_dim)),
        "w1":  u(ks[4], (hidden_dim, hidden_dim)),
        "b1":  u(ks[5], (1, hidden_dim)),
        "wz":  u(ks[6], (hidden_dim, output_dim)),
        "bz":  u(ks[7], (1, output_dim)),
    }


if __name__ == "__main__":
    SEQ, BATCH = 8, 2
    INPUT_DIM, HIDDEN_DIM, OUTPUT_DIM = 8, 32, 16

    key = jax.random.PRNGKey(0)
    k_x, k_h, k_c, k_p = jax.random.split(key, 4)

    x = jax.random.normal(k_x, (SEQ, BATCH, INPUT_DIM), jnp.float32)
    h0 = jax.random.normal(k_h, (1, BATCH, HIDDEN_DIM), jnp.float32)
    c0 = jax.random.normal(k_c, (1, BATCH, HIDDEN_DIM), jnp.float32)
    params = init_params(k_p, INPUT_DIM, HIDDEN_DIM, OUTPUT_DIM)

    fwd = jax.jit(functools.partial(encoder_forward, params=params))
    emb, (h_n, c_n) = fwd(x, (h0, c0))
    jax.block_until_ready((emb, h_n, c_n))

    # Correctness check against pure-JAX reference.
    emb_r, (h_r, c_r) = encoder_reference(x, (h0, c0), params)
    assert jnp.allclose(emb, emb_r, rtol=1e-4, atol=1e-4), "embedding mismatch"
    assert jnp.allclose(h_n, h_r, rtol=1e-4, atol=1e-4), "h_n mismatch"
    assert jnp.allclose(c_n, c_r, rtol=1e-4, atol=1e-4), "c_n mismatch"

    print("KERNEL_OK")
</pallas_src>

<mosaic_0001>
module attributes {stable_mosaic.version = 11 : i64} {
  func.func @encoder_kernel(%arg0: i32, %arg1: memref<16x8xf32, #tpu.memory_space<vmem>>, %arg2: memref<2x32xf32, #tpu.memory_space<vmem>>, %arg3: memref<2x32xf32, #tpu.memory_space<vmem>>, %arg4: memref<8x128xf32, #tpu.memory_space<vmem>>, %arg5: memref<32x128xf32, #tpu.memory_space<vmem>>, %arg6: memref<1x128xf32, #tpu.memory_space<vmem>>, %arg7: memref<32x32xf32, #tpu.memory_space<vmem>>, %arg8: memref<1x32xf32, #tpu.memory_space<vmem>>, %arg9: memref<32x16xf32, #tpu.memory_space<vmem>>, %arg10: memref<1x16xf32, #tpu.memory_space<vmem>>, %arg11: memref<16x16xf32, #tpu.memory_space<vmem>>, %arg12: memref<2x32xf32, #tpu.memory_space<vmem>>, %arg13: memref<2x32xf32, #tpu.memory_space<vmem>>, %arg14: memref<16x32xf32, #tpu.memory_space<vmem>>) attributes {dimension_semantics = [#tpu.dimension_semantics<arbitrary>], iteration_bounds = array<i64: 1>, scalar_prefetch = 0 : i64, scratch_operands = 1 : i64, tpu.core_type = #tpu.core_type<tc>, window_params = [{pipeline_mode = #tpu.pipeline_mode<synchronous>, transform_indices = @transform_0, window_bounds = array<i64: 16, 8>}, {pipeline_mode = #tpu.pipeline_mode<synchronous>, transform_indices = @transform_1, window_bounds = array<i64: 2, 32>}, {pipeline_mode = #tpu.pipeline_mode<synchronous>, transform_indices = @transform_2, window_bounds = array<i64: 2, 32>}, {pipeline_mode = #tpu.pipeline_mode<synchronous>, transform_indices = @transform_3, window_bounds = array<i64: 8, 128>}, {pipeline_mode = #tpu.pipeline_mode<synchronous>, transform_indices = @transform_4, window_bounds = array<i64: 32, 128>}, {pipeline_mode = #tpu.pipeline_mode<synchronous>, transform_indices = @transform_5, window_bounds = array<i64: 1, 128>}, {pipeline_mode = #tpu.pipeline_mode<synchronous>, transform_indices = @transform_6, window_bounds = array<i64: 32, 32>}, {pipeline_mode = #tpu.pipeline_mode<synchronous>, transform_indices = @transform_7, window_bounds = array<i64: 1, 32>}, {pipeline_mode = #tpu.pipeline_mode<synchronous>, transform_indices = @transform_8, window_bounds = array<i64: 32, 16>}, {pipeline_mode = #tpu.pipeline_mode<synchronous>, transform_indices = @transform_9, window_bounds = array<i64: 1, 16>}, {pipeline_mode = #tpu.pipeline_mode<synchronous>, transform_indices = @transform_10, window_bounds = array<i64: 16, 16>}, {pipeline_mode = #tpu.pipeline_mode<synchronous>, transform_indices = @transform_11, window_bounds = array<i64: 2, 32>}, {pipeline_mode = #tpu.pipeline_mode<synchronous>, transform_indices = @transform_12, window_bounds = array<i64: 2, 32>}]} {
    %c0 = arith.constant 0 : index
    %c0_0 = arith.constant 0 : index
    %0 = vector.load %arg1[%c0, %c0_0] : memref<16x8xf32, #tpu.memory_space<vmem>>, vector<16x8xf32>
    %c0_1 = arith.constant 0 : index
    %c0_2 = arith.constant 0 : index
    %1 = vector.load %arg4[%c0_1, %c0_2] : memref<8x128xf32, #tpu.memory_space<vmem>>, vector<8x128xf32>
    %cst = arith.constant dense<0.000000e+00> : vector<16x128xf32>
    %2 = tpu.matmul %0, %1, %cst {dimension_numbers = #tpu.dot_dimension_numbers<[1], [0], [0], [1], [0, 0, 1, 1], [], []>} : vector<16x8xf32>, vector<8x128xf32>, vector<16x128xf32> -> vector<16x128xf32>
    %c0_3 = arith.constant 0 : index
    %c0_4 = arith.constant 0 : index
    %3 = vector.load %arg6[%c0_3, %c0_4] : memref<1x128xf32, #tpu.memory_space<vmem>>, vector<1x128xf32>
    %4 = vector.broadcast %3 : vector<1x128xf32> to vector<16x128xf32>
    %5 = arith.addf %2, %4 : vector<16x128xf32>
    %c0_5 = arith.constant 0 : index
    %c0_6 = arith.constant 0 : index
    %6 = vector.load %arg5[%c0_5, %c0_6] : memref<32x128xf32, #tpu.memory_space<vmem>>, vector<32x128xf32>
    %c0_7 = arith.constant 0 : index
    %c0_8 = arith.constant 0 : index
    %7 = vector.load %arg2[%c0_7, %c0_8] : memref<2x32xf32, #tpu.memory_space<vmem>>, vector<2x32xf32>
    %c0_9 = arith.constant 0 : index
    %c0_10 = arith.constant 0 : index
    %8 = vector.load %arg3[%c0_9, %c0_10] : memref<2x32xf32, #tpu.memory_space<vmem>>, vector<2x32xf32>
    %9 = vector.extract_strided_slice %5 {offsets = [0, 0], sizes = [2, 128], strides = [1, 1]} : vector<16x128xf32> to vector<2x128xf32>
    %cst_11 = arith.constant dense<0.000000e+00> : vector<2x128xf32>
    %10 = tpu.matmul %7, %6, %cst_11 {dimension_numbers = #tpu.dot_dimension_numbers<[1], [0], [0], [1], [0, 0, 1, 1], [], []>} : vector<2x32xf32>, vector<32x128xf32>, vector<2x128xf32> -> vector<2x128xf32>
    %11 = arith.addf %9, %10 : vector<2x128xf32>
    %12 = vector.extract_strided_slice %11 {offsets = [0, 0], sizes = [2, 32], strides = [1, 1]} : vector<2x128xf32> to vector<2x32xf32>
    %13 = arith.negf %12 : vector<2x32xf32>
    %14 = math.exp %13 : vector<2x32xf32>
    %cst_12 = arith.constant 1.000000e+00 : f32
    %15 = vector.broadcast %cst_12 : f32 to vector<2x32xf32>
    %16 = arith.addf %15, %14 : vector<2x32xf32>
    %17 = arith.divf %15, %16 : vector<2x32xf32>
    %18 = vector.extract_strided_slice %11 {offsets = [0, 32], sizes = [2, 32], strides = [1, 1]} : vector<2x128xf32> to vector<2x32xf32>
    %19 = arith.negf %18 : vector<2x32xf32>
    %20 = math.exp %19 : vector<2x32xf32>
    %cst_13 = arith.constant 1.000000e+00 : f32
    %21 = vector.broadcast %cst_13 : f32 to vector<2x32xf32>
    %22 = arith.addf %21, %20 : vector<2x32xf32>
    %23 = arith.divf %21, %22 : vector<2x32xf32>
    %24 = vector.extract_strided_slice %11 {offsets = [0, 64], sizes = [2, 32], strides = [1, 1]} : vector<2x128xf32> to vector<2x32xf32>
    %25 = math.tanh %24 : vector<2x32xf32>
    %26 = vector.extract_strided_slice %11 {offsets = [0, 96], sizes = [2, 32], strides = [1, 1]} : vector<2x128xf32> to vector<2x32xf32>
    %27 = arith.negf %26 : vector<2x32xf32>
    %28 = math.exp %27 : vector<2x32xf32>
    %cst_14 = arith.constant 1.000000e+00 : f32
    %29 = vector.broadcast %cst_14 : f32 to vector<2x32xf32>
    %30 = arith.addf %29, %28 : vector<2x32xf32>
    %31 = arith.divf %29, %30 : vector<2x32xf32>
    %32 = arith.mulf %23, %8 : vector<2x32xf32>
    %33 = arith.mulf %17, %25 : vector<2x32xf32>
    %34 = arith.addf %32, %33 : vector<2x32xf32>
    %35 = math.tanh %34 : vector<2x32xf32>
    %36 = arith.mulf %31, %35 : vector<2x32xf32>
    %c0_15 = arith.constant 0 : index
    %c0_16 = arith.constant 0 : index
    %37 = vector.load %arg14[%c0_15, %c0_16] : memref<16x32xf32, #tpu.memory_space<vmem>>, vector<2x32xf32>
    tpu.vector_store %arg14[%c0_15, %c0_16], %36 {strides = array<i32>} : memref<16x32xf32, #tpu.memory_space<vmem>>, vector<2x32xf32>,
    %38 = vector.extract_strided_slice %5 {offsets = [2, 0], sizes = [2, 128], strides = [1, 1]} : vector<16x128xf32> to vector<2x128xf32>
    %cst_17 = arith.constant dense<0.000000e+00> : vector<2x128xf32>
    %39 = tpu.matmul %36, %6, %cst_17 {dimension_numbers = #tpu.dot_dimension_numbers<[1], [0], [0], [1], [0, 0, 1, 1], [], []>} : vector<2x32xf32>, vector<32x128xf32>, vector<2x128xf32> -> vector<2x128xf32>
    %40 = arith.addf %38, %39 : vector<2x128xf32>
    %41 = vector.extract_strided_slice %40 {offsets = [0, 0], sizes = [2, 32], strides = [1, 1]} : vector<2x128xf32> to vector<2x32xf32>
    %42 = arith.negf %41 : vector<2x32xf32>
    %43 = math.exp %42 : vector<2x32xf32>
    %cst_18 = arith.constant 1.000000e+00 : f32
    %44 = vector.broadcast %cst_18 : f32 to vector<2x32xf32>
    %45 = arith.addf %44, %43 : vector<2x32xf32>
    %46 = arith.divf %44, %45 : vector<2x32xf32>
    %47 = vector.extract_strided_slice %40 {offsets = [0, 32], sizes = [2, 32], strides = [1, 1]} : vector<2x128xf32> to vector<2x32xf32>
    %48 = arith.negf %47 : vector<2x32xf32>
    %49 = math.exp %48 : vector<2x32xf32>
    %cst_19 = arith.constant 1.000000e+00 : f32
    %50 = vector.broadcast %cst_19 : f32 to vector<2x32xf32>
    %51 = arith.addf %50, %49 : vector<2x32xf32>
    %52 = arith.divf %50, %51 : vector<2x32xf32>
    %53 = vector.extract_strided_slice %40 {offsets = [0, 64], sizes = [2, 32], strides = [1, 1]} : vector<2x128xf32> to vector<2x32xf32>
    %54 = math.tanh %53 : vector<2x32xf32>
    %55 = vector.extract_strided_slice %40 {offsets = [0, 96], sizes = [2, 32], strides = [1, 1]} : vector<2x128xf32> to vector<2x32xf32>
    %56 = arith.negf %55 : vector<2x32xf32>
    %57 = math.exp %56 : vector<2x32xf32>
    %cst_20 = arith.constant 1.000000e+00 : f32
    %58 = vector.broadcast %cst_20 : f32 to vector<2x32xf32>
    %59 = arith.addf %58, %57 : vector<2x32xf32>
    %60 = arith.divf %58, %59 : vector<2x32xf32>
    %61 = arith.mulf %52, %34 : vector<2x32xf32>
    %62 = arith.mulf %46, %54 : vector<2x32xf32>
    %63 = arith.addf %61, %62 : vector<2x32xf32>
    %64 = math.tanh %63 : vector<2x32xf32>
    %65 = arith.mulf %60, %64 : vector<2x32xf32>
    %c2 = arith.constant 2 : index
    %c0_21 = arith.constant 0 : index
    %66 = vector.load %arg14[%c2, %c0_21] : memref<16x32xf32, #tpu.memory_space<vmem>>, vector<2x32xf32>
    tpu.vector_store %arg14[%c2, %c0_21], %65 {strides = array<i32>} : memref<16x32xf32, #tpu.memory_space<vmem>>, vector<2x32xf32>,
    %67 = vector.extract_strided_slice %5 {offsets = [4, 0], sizes = [2, 128], strides = [1, 1]} : vector<16x128xf32> to vector<2x128xf32>
    %cst_22 = arith.constant dense<0.000000e+00> : vector<2x128xf32>
    %68 = tpu.matmul %65, %6, %cst_22 {dimension_numbers = #tpu.dot_dimension_numbers<[1], [0], [0], [1], [0, 0, 1, 1], [], []>} : vector<2x32xf32>, vector<32x128xf32>, vector<2x128xf32> -> vector<2x128xf32>
    %69 = arith.addf %67, %68 : vector<2x128xf32>
    %70 = vector.extract_strided_slice %69 {offsets = [0, 0], sizes = [2, 32], strides = [1, 1]} : vector<2x128xf32> to vector<2x32xf32>
    %71 = arith.negf %70 : vector<2x32xf32>
    %72 = math.exp %71 : vector<2x32xf32>
    %cst_23 = arith.constant 1.000000e+00 : f32
    %73 = vector.broadcast %cst_23 : f32 to vector<2x32xf32>
    %74 = arith.addf %73, %72 : vector<2x32xf32>
    %75 = arith.divf %73, %74 : vector<2x32xf32>
    %76 = vector.extract_strided_slice %69 {offsets = [0, 32], sizes = [2, 32], strides = [1, 1]} : vector<2x128xf32> to vector<2x32xf32>
    %77 = arith.negf %76 : vector<2x32xf32>
    %78 = math.exp %77 : vector<2x32xf32>
    %cst_24 = arith.constant 1.000000e+00 : f32
    %79 = vector.broadcast %cst_24 : f32 to vector<2x32xf32>
    %80 = arith.addf %79, %78 : vector<2x32xf32>
    %81 = arith.divf %79, %80 : vector<2x32xf32>
    %82 = vector.extract_strided_slice %69 {offsets = [0, 64], sizes = [2, 32], strides = [1, 1]} : vector<2x128xf32> to vector<2x32xf32>
    %83 = math.tanh %82 : vector<2x32xf32>
    %84 = vector.extract_strided_slice %69 {offsets = [0, 96], sizes = [2, 32], strides = [1, 1]} : vector<2x128xf32> to vector<2x32xf32>
    %85 = arith.negf %84 : vector<2x32xf32>
    %86 = math.exp %85 : vector<2x32xf32>
    %cst_25 = arith.constant 1.000000e+00 : f32
    %87 = vector.broadcast %cst_25 : f32 to vector<2x32xf32>
    %88 = arith.addf %87, %86 : vector<2x32xf32>
    %89 = arith.divf %87, %88 : vector<2x32xf32>
    %90 = arith.mulf %81, %63 : vector<2x32xf32>
    %91 = arith.mulf %75, %83 : vector<2x32xf32>
    %92 = arith.addf %90, %91 : vector<2x32xf32>
    %93 = math.tanh %92 : vector<2x32xf32>
    %94 = arith.mulf %89, %93 : vector<2x32xf32>
    %c4 = arith.constant 4 : index
    %c0_26 = arith.constant 0 : index
    %95 = vector.load %arg14[%c4, %c0_26] : memref<16x32xf32, #tpu.memory_space<vmem>>, vector<2x32xf32>
    tpu.vector_store %arg14[%c4, %c0_26], %94 {strides = array<i32>} : memref<16x32xf32, #tpu.memory_space<vmem>>, vector<2x32xf32>,
    %96 = vector.extract_strided_slice %5 {offsets = [6, 0], sizes = [2, 128], strides = [1, 1]} : vector<16x128xf32> to vector<2x128xf32>
    %cst_27 = arith.constant dense<0.000000e+00> : vector<2x128xf32>
    %97 = tpu.matmul %94, %6, %cst_27 {dimension_numbers = #tpu.dot_dimension_numbers<[1], [0], [0], [1], [0, 0, 1, 1], [], []>} : vector<2x32xf32>, vector<32x128xf32>, vector<2x128xf32> -> vector<2x128xf32>
    %98 = arith.addf %96, %97 : vector<2x128xf32>
    %99 = vector.extract_strided_slice %98 {offsets = [0, 0], sizes = [2, 32], strides = [1, 1]} : vector<2x128xf32> to vector<2x32xf32>
    %100 = arith.negf %99 : vector<2x32xf32>
    %101 = math.exp %100 : vector<2x32xf32>
    %cst_28 = arith.constant 1.000000e+00 : f32
    %102 = vector.broadcast %cst_28 : f32 to vector<2x32xf32>
    %103 = arith.addf %102, %101 : vector<2x32xf32>
    %104 = arith.divf %102, %103 : vector<2x32xf32>
    %105 = vector.extract_strided_slice %98 {offsets = [0, 32], sizes = [2, 32], strides = [1, 1]} : vector<2x128xf32> to vector<2x32xf32>
    %106 = arith.negf %105 : vector<2x32xf32>
    %107 = math.exp %106 : vector<2x32xf32>
    %cst_29 = arith.constant 1.000000e+00 : f32
    %108 = vector.broadcast %cst_29 : f32 to vector<2x32xf32>
    %109 = arith.addf %108, %107 : vector<2x32xf32>
    %110 = arith.divf %108, %109 : vector<2x32xf32>
    %111 = vector.extract_strided_slice %98 {offsets = [0, 64], sizes = [2, 32], strides = [1, 1]} : vector<2x128xf32> to vector<2x32xf32>
    %112 = math.tanh %111 : vector<2x32xf32>
    %113 = vector.extract_strided_slice %98 {offsets = [0, 96], sizes = [2, 32], strides = [1, 1]} : vector<2x128xf32> to vector<2x32xf32>
    %114 = arith.negf %113 : vector<2x32xf32>
    %115 = math.exp %114 : vector<2x32xf32>
    %cst_30 = arith.constant 1.000000e+00 : f32
    %116 = vector.broadcast %cst_30 : f32 to vector<2x32xf32>
    %117 = arith.addf %116, %115 : vector<2x32xf32>
    %118 = arith.divf %116, %117 : vector<2x32xf32>
    %119 = arith.mulf %110, %92 : vector<2x32xf32>
    %120 = arith.mulf %104, %112 : vector<2x32xf32>
    %121 = arith.addf %119, %120 : vector<2x32xf32>
    %122 = math.tanh %121 : vector<2x32xf32>
    %123 = arith.mulf %118, %122 : vector<2x32xf32>
    %c6 = arith.constant 6 : index
    %c0_31 = arith.constant 0 : index
    %124 = vector.load %arg14[%c6, %c0_31] : memref<16x32xf32, #tpu.memory_space<vmem>>, vector<2x32xf32>
    tpu.vector_store %arg14[%c6, %c0_31], %123 {strides = array<i32>} : memref<16x32xf32, #tpu.memory_space<vmem>>, vector<2x32xf32>,
    %125 = vector.extract_strided_slice %5 {offsets = [8, 0], sizes = [2, 128], strides = [1, 1]} : vector<16x128xf32> to vector<2x128xf32>
    %cst_32 = arith.constant dense<0.000000e+00> : vector<2x128xf32>
    %126 = tpu.matmul %123, %6, %cst_32 {dimension_numbers = #tpu.dot_dimension_numbers<[1], [0], [0], [1], [0, 0, 1, 1], [], []>} : vector<2x32xf32>, vector<32x128xf32>, vector<2x128xf32> -> vector<2x128xf32>
    %127 = arith.addf %125, %126 : vector<2x128xf32>
    %128 = vector.extract_strided_slice %127 {offsets = [0, 0], sizes = [2, 32], strides = [1, 1]} : vector<2x128xf32> to vector<2x32xf32>
    %129 = arith.negf %128 : vector<2x32xf32>
    %130 = math.exp %129 : vector<2x32xf32>
    %cst_33 = arith.constant 1.000000e+00 : f32
    %131 = vector.broadcast %cst_33 : f32 to vector<2x32xf32>
    %132 = arith.addf %131, %130 : vector<2x32xf32>
    %133 = arith.divf %131, %132 : vector<2x32xf32>
    %134 = vector.extract_strided_slice %127 {offsets = [0, 32], sizes = [2, 32], strides = [1, 1]} : vector<2x128xf32> to vector<2x32xf32>
    %135 = arith.negf %134 : vector<2x32xf32>
    %136 = math.exp %135 : vector<2x32xf32>
    %cst_34 = arith.constant 1.000000e+00 : f32
    %137 = vector.broadcast %cst_34 : f32 to vector<2x32xf32>
    %138 = arith.addf %137, %136 : vector<2x32xf32>
    %139 = arith.divf %137, %138 : vector<2x32xf32>
    %140 = vector.extract_strided_slice %127 {offsets = [0, 64], sizes = [2, 32], strides = [1, 1]} : vector<2x128xf32> to vector<2x32xf32>
    %141 = math.tanh %140 : vector<2x32xf32>
    %142 = vector.extract_strided_slice %127 {offsets = [0, 96], sizes = [2, 32], strides = [1, 1]} : vector<2x128xf32> to vector<2x32xf32>
    %143 = arith.negf %142 : vector<2x32xf32>
    %144 = math.exp %143 : vector<2x32xf32>
    %cst_35 = arith.constant 1.000000e+00 : f32
    %145 = vector.broadcast %cst_35 : f32 to vector<2x32xf32>
    %146 = arith.addf %145, %144 : vector<2x32xf32>
    %147 = arith.divf %145, %146 : vector<2x32xf32>
    %148 = arith.mulf %139, %121 : vector<2x32xf32>
    %149 = arith.mulf %133, %141 : vector<2x32xf32>
    %150 = arith.addf %148, %149 : vector<2x32xf32>
    %151 = math.tanh %150 : vector<2x32xf32>
    %152 = arith.mulf %147, %151 : vector<2x32xf32>
    %c8 = arith.constant 8 : index
    %c0_36 = arith.constant 0 : index
    %153 = vector.load %arg14[%c8, %c0_36] : memref<16x32xf32, #tpu.memory_space<vmem>>, vector<2x32xf32>
    tpu.vector_store %arg14[%c8, %c0_36], %152 {strides = array<i32>} : memref<16x32xf32, #tpu.memory_space<vmem>>, vector<2x32xf32>,
    %154 = vector.extract_strided_slice %5 {offsets = [10, 0], sizes = [2, 128], strides = [1, 1]} : vector<16x128xf32> to vector<2x128xf32>
    %cst_37 = arith.constant dense<0.000000e+00> : vector<2x128xf32>
    %155 = tpu.matmul %152, %6, %cst_37 {dimension_numbers = #tpu.dot_dimension_numbers<[1], [0], [0], [1], [0, 0, 1, 1], [], []>} : vector<2x32xf32>, vector<32x128xf32>, vector<2x128xf32> -> vector<2x128xf32>
    %156 = arith.addf %154, %155 : vector<2x128xf32>
    %157 = vector.extract_strided_slice %156 {offsets = [0, 0], sizes = [2, 32], strides = [1, 1]} : vector<2x128xf32> to vector<2x32xf32>
    %158 = arith.negf %157 : vector<2x32xf32>
    %159 = math.exp %158 : vector<2x32xf32>
    %cst_38 = arith.constant 1.000000e+00 : f32
    %160 = vector.broadcast %cst_38 : f32 to vector<2x32xf32>
    %161 = arith.addf %160, %159 : vector<2x32xf32>
    %162 = arith.divf %160, %161 : vector<2x32xf32>
    %163 = vector.extract_strided_slice %156 {offsets = [0, 32], sizes = [2, 32], strides = [1, 1]} : vector<2x128xf32> to vector<2x32xf32>
    %164 = arith.negf %163 : vector<2x32xf32>
    %165 = math.exp %164 : vector<2x32xf32>
    %cst_39 = arith.constant 1.000000e+00 : f32
    %166 = vector.broadcast %cst_39 : f32 to vector<2x32xf32>
    %167 = arith.addf %166, %165 : vector<2x32xf32>
    %168 = arith.divf %166, %167 : vector<2x32xf32>
    %169 = vector.extract_strided_slice %156 {offsets = [0, 64], sizes = [2, 32], strides = [1, 1]} : vector<2x128xf32> to vector<2x32xf32>
    %170 = math.tanh %169 : vector<2x32xf32>
    %171 = vector.extract_strided_slice %156 {offsets = [0, 96], sizes = [2, 32], strides = [1, 1]} : vector<2x128xf32> to vector<2x32xf32>
    %172 = arith.negf %171 : vector<2x32xf32>
    %173 = math.exp %172 : vector<2x32xf32>
    %cst_40 = arith.constant 1.000000e+00 : f32
    %174 = vector.broadcast %cst_40 : f32 to vector<2x32xf32>
    %175 = arith.addf %174, %173 : vector<2x32xf32>
    %176 = arith.divf %174, %175 : vector<2x32xf32>
    %177 = arith.mulf %168, %150 : vector<2x32xf32>
    %178 = arith.mulf %162, %170 : vector<2x32xf32>
    %179 = arith.addf %177, %178 : vector<2x32xf32>
    %180 = math.tanh %179 : vector<2x32xf32>
    %181 = arith.mulf %176, %180 : vector<2x32xf32>
    %c10 = arith.constant 10 : index
    %c0_41 = arith.constant 0 : index
    %182 = vector.load %arg14[%c10, %c0_41] : memref<16x32xf32, #tpu.memory_space<vmem>>, vector<2x32xf32>
    tpu.vector_store %arg14[%c10, %c0_41], %181 {strides = array<i32>} : memref<16x32xf32, #tpu.memory_space<vmem>>, vector<2x32xf32>,
    %183 = vector.extract_strided_slice %5 {offsets = [12, 0], sizes = [2, 128], strides = [1, 1]} : vector<16x128xf32> to vector<2x128xf32>
    %cst_42 = arith.constant dense<0.000000e+00> : vector<2x128xf32>
    %184 = tpu.matmul %181, %6, %cst_42 {dimension_numbers = #tpu.dot_dimension_numbers<[1], [0], [0], [1], [0, 0, 1, 1], [], []>} : vector<2x32xf32>, vector<32x128xf32>, vector<2x128xf32> -> vector<2x128xf32>
    %185 = arith.addf %183, %184 : vector<2x128xf32>
    %186 = vector.extract_strided_slice %185 {offsets = [0, 0], sizes = [2, 32], strides = [1, 1]} : vector<2x128xf32> to vector<2x32xf32>
    %187 = arith.negf %186 : vector<2x32xf32>
    %188 = math.exp %187 : vector<2x32xf32>
    %cst_43 = arith.constant 1.000000e+00 : f32
    %189 = vector.broadcast %cst_43 : f32 to vector<2x32xf32>
    %190 = arith.addf %189, %188 : vector<2x32xf32>
    %191 = arith.divf %189, %190 : vector<2x32xf32>
    %192 = vector.extract_strided_slice %185 {offsets = [0, 32], sizes = [2, 32], strides = [1, 1]} : vector<2x128xf32> to vector<2x32xf32>
    %193 = arith.negf %192 : vector<2x32xf32>
    %194 = math.exp %193 : vector<2x32xf32>
    %cst_44 = arith.constant 1.000000e+00 : f32
    %195 = vector.broadcast %cst_44 : f32 to vector<2x32xf32>
    %196 = arith.addf %195, %194 : vector<2x32xf32>
    %197 = arith.divf %195, %196 : vector<2x32xf32>
    %198 = vector.extract_strided_slice %185 {offsets = [0, 64], sizes = [2, 32], strides = [1, 1]} : vector<2x128xf32> to vector<2x32xf32>
    %199 = math.tanh %198 : vector<2x32xf32>
    %200 = vector.extract_strided_slice %185 {offsets = [0, 96], sizes = [2, 32], strides = [1, 1]} : vector<2x128xf32> to vector<2x32xf32>
    %201 = arith.negf %200 : vector<2x32xf32>
    %202 = math.exp %201 : vector<2x32xf32>
    %cst_45 = arith.constant 1.000000e+00 : f32
    %203 = vector.broadcast %cst_45 : f32 to vector<2x32xf32>
    %204 = arith.addf %203, %202 : vector<2x32xf32>
    %205 = arith.divf %203, %204 : vector<2x32xf32>
    %206 = arith.mulf %197, %179 : vector<2x32xf32>
    %207 = arith.mulf %191, %199 : vector<2x32xf32>
    %208 = arith.addf %206, %207 : vector<2x32xf32>
    %209 = math.tanh %208 : vector<2x32xf32>
    %210 = arith.mulf %205, %209 : vector<2x32xf32>
    %c12 = arith.constant 12 : index
    %c0_46 = arith.constant 0 : index
    %211 = vector.load %arg14[%c12, %c0_46] : memref<16x32xf32, #tpu.memory_space<vmem>>, vector<2x32xf32>
    tpu.vector_store %arg14[%c12, %c0_46], %210 {strides = array<i32>} : memref<16x32xf32, #tpu.memory_space<vmem>>, vector<2x32xf32>,
    %212 = vector.extract_strided_slice %5 {offsets = [14, 0], sizes = [2, 128], strides = [1, 1]} : vector<16x128xf32> to vector<2x128xf32>
    %cst_47 = arith.constant dense<0.000000e+00> : vector<2x128xf32>
    %213 = tpu.matmul %210, %6, %cst_47 {dimension_numbers = #tpu.dot_dimension_numbers<[1], [0], [0], [1], [0, 0, 1, 1], [], []>} : vector<2x32xf32>, vector<32x128xf32>, vector<2x128xf32> -> vector<2x128xf32>
    %214 = arith.addf %212, %213 : vector<2x128xf32>
    %215 = vector.extract_strided_slice %214 {offsets = [0, 0], sizes = [2, 32], strides = [1, 1]} : vector<2x128xf32> to vector<2x32xf32>
    %216 = arith.negf %215 : vector<2x32xf32>
    %217 = math.exp %216 : vector<2x32xf32>
    %cst_48 = arith.constant 1.000000e+00 : f32
    %218 = vector.broadcast %cst_48 : f32 to vector<2x32xf32>
    %219 = arith.addf %218, %217 : vector<2x32xf32>
    %220 = arith.divf %218, %219 : vector<2x32xf32>
    %221 = vector.extract_strided_slice %214 {offsets = [0, 32], sizes = [2, 32], strides = [1, 1]} : vector<2x128xf32> to vector<2x32xf32>
    %222 = arith.negf %221 : vector<2x32xf32>
    %223 = math.exp %222 : vector<2x32xf32>
    %cst_49 = arith.constant 1.000000e+00 : f32
    %224 = vector.broadcast %cst_49 : f32 to vector<2x32xf32>
    %225 = arith.addf %224, %223 : vector<2x32xf32>
    %226 = arith.divf %224, %225 : vector<2x32xf32>
    %227 = vector.extract_strided_slice %214 {offsets = [0, 64], sizes = [2, 32], strides = [1, 1]} : vector<2x128xf32> to vector<2x32xf32>
    %228 = math.tanh %227 : vector<2x32xf32>
    %229 = vector.extract_strided_slice %214 {offsets = [0, 96], sizes = [2, 32], strides = [1, 1]} : vector<2x128xf32> to vector<2x32xf32>
    %230 = arith.negf %229 : vector<2x32xf32>
    %231 = math.exp %230 : vector<2x32xf32>
    %cst_50 = arith.constant 1.000000e+00 : f32
    %232 = vector.broadcast %cst_50 : f32 to vector<2x32xf32>
    %233 = arith.addf %232, %231 : vector<2x32xf32>
    %234 = arith.divf %232, %233 : vector<2x32xf32>
    %235 = arith.mulf %226, %208 : vector<2x32xf32>
    %236 = arith.mulf %220, %228 : vector<2x32xf32>
    %237 = arith.addf %235, %236 : vector<2x32xf32>
    %238 = math.tanh %237 : vector<2x32xf32>
    %239 = arith.mulf %234, %238 : vector<2x32xf32>
    %c14 = arith.constant 14 : index
    %c0_51 = arith.constant 0 : index
    %240 = vector.load %arg14[%c14, %c0_51] : memref<16x32xf32, #tpu.memory_space<vmem>>, vector<2x32xf32>
    tpu.vector_store %arg14[%c14, %c0_51], %239 {strides = array<i32>} : memref<16x32xf32, #tpu.memory_space<vmem>>, vector<2x32xf32>,
    %c0_52 = arith.constant 0 : index
    %c0_53 = arith.constant 0 : index
    %241 = vector.load %arg14[%c0_52, %c0_53] : memref<16x32xf32, #tpu.memory_space<vmem>>, vector<16x32xf32>
    %c0_54 = arith.constant 0 : index
    %c0_55 = arith.constant 0 : index
    %242 = vector.load %arg7[%c0_54, %c0_55] : memref<32x32xf32, #tpu.memory_space<vmem>>, vector<32x32xf32>
    %cst_56 = arith.constant dense<0.000000e+00> : vector<16x32xf32>
    %243 = tpu.matmul %241, %242, %cst_56 {dimension_numbers = #tpu.dot_dimension_numbers<[1], [0], [0], [1], [0, 0, 1, 1], [], []>} : vector<16x32xf32>, vector<32x32xf32>, vector<16x32xf32> -> vector<16x32xf32>
    %c0_57 = arith.constant 0 : index
    %c0_58 = arith.constant 0 : index
    %244 = vector.load %arg8[%c0_57, %c0_58] : memref<1x32xf32, #tpu.memory_space<vmem>>, vector<1x32xf32>
    %245 = vector.broadcast %244 : vector<1x32xf32> to vector<16x32xf32>
    %246 = arith.addf %243, %245 : vector<16x32xf32>
    %cst_59 = arith.constant 0.000000e+00 : f32
    %247 = vector.broadcast %cst_59 : f32 to vector<16x32xf32>
    %248 = arith.maximumf %246, %247 : vector<16x32xf32>
    %c0_60 = arith.constant 0 : index
    %c0_61 = arith.constant 0 : index
    %249 = vector.load %arg9[%c0_60, %c0_61] : memref<32x16xf32, #tpu.memory_space<vmem>>, vector<32x16xf32>
    %cst_62 = arith.constant dense<0.000000e+00> : vector<16x16xf32>
    %250 = tpu.matmul %248, %249, %cst_62 {dimension_numbers = #tpu.dot_dimension_numbers<[1], [0], [0], [1], [0, 0, 1, 1], [], []>} : vector<16x32xf32>, vector<32x16xf32>, vector<16x16xf32> -> vector<16x16xf32>
    %c0_63 = arith.constant 0 : index
    %c0_64 = arith.constant 0 : index
    %251 = vector.load %arg10[%c0_63, %c0_64] : memref<1x16xf32, #tpu.memory_space<vmem>>, vector<1x16xf32>
    %252 = vector.broadcast %251 : vector<1x16xf32> to vector<16x16xf32>
    %253 = arith.addf %250, %252 : vector<16x16xf32>
    %c0_65 = arith.constant 0 : index
    %c0_66 = arith.constant 0 : index
    %254 = vector.load %arg11[%c0_65, %c0_66] : memref<16x16xf32, #tpu.memory_space<vmem>>, vector<16x16xf32>
    tpu.vector_store %arg11[%c0_65, %c0_66], %253 {strides = array<i32>} : memref<16x16xf32, #tpu.memory_space<vmem>>, vector<16x16xf32>,
    %c0_67 = arith.constant 0 : index
    %c0_68 = arith.constant 0 : index
    %255 = vector.load %arg12[%c0_67, %c0_68] : memref<2x32xf32, #tpu.memory_space<vmem>>, vector<2x32xf32>
    tpu.vector_store %arg12[%c0_67, %c0_68], %239 {strides = array<i32>} : memref<2x32xf32, #tpu.memory_space<vmem>>, vector<2x32xf32>,
    %c0_69 = arith.constant 0 : index
    %c0_70 = arith.constant 0 : index
    %256 = vector.load %arg13[%c0_69, %c0_70] : memref<2x32xf32, #tpu.memory_space<vmem>>, vector<2x32xf32>
    tpu.vector_store %arg13[%c0_69, %c0_70], %237 {strides = array<i32>} : memref<2x32xf32, #tpu.memory_space<vmem>>, vector<2x32xf32>,
    return
  }
  func.func @transform_0(%arg0: i32) -> (i32, i32) {
    %c0_i32 = arith.constant 0 : i32
    %c0_i32_0 = arith.constant 0 : i32
    %c0_i32_1 = arith.constant 0 : i32
    return %c0_i32, %c0_i32_0 : i32, i32
  }
  func.func @transform_1(%arg0: i32) -> (i32, i32) {
    %c0_i32 = arith.constant 0 : i32
    %c0_i32_0 = arith.constant 0 : i32
    %c0_i32_1 = arith.constant 0 : i32
    return %c0_i32, %c0_i32_0 : i32, i32
  }
  func.func @transform_2(%arg0: i32) -> (i32, i32) {
    %c0_i32 = arith.constant 0 : i32
    %c0_i32_0 = arith.constant 0 : i32
    %c0_i32_1 = arith.constant 0 : i32
    return %c0_i32, %c0_i32_0 : i32, i32
  }
  func.func @transform_3(%arg0: i32) -> (i32, i32) {
    %c0_i32 = arith.constant 0 : i32
    %c0_i32_0 = arith.constant 0 : i32
    %c0_i32_1 = arith.constant 0 : i32
    return %c0_i32, %c0_i32_0 : i32, i32
  }
  func.func @transform_4(%arg0: i32) -> (i32, i32) {
    %c0_i32 = arith.constant 0 : i32
    %c0_i32_0 = arith.constant 0 : i32
    %c0_i32_1 = arith.constant 0 : i32
    return %c0_i32, %c0_i32_0 : i32, i32
  }
  func.func @transform_5(%arg0: i32) -> (i32, i32) {
    %c0_i32 = arith.constant 0 : i32
    %c0_i32_0 = arith.constant 0 : i32
    %c0_i32_1 = arith.constant 0 : i32
    return %c0_i32, %c0_i32_0 : i32, i32
  }
  func.func @transform_6(%arg0: i32) -> (i32, i32) {
    %c0_i32 = arith.constant 0 : i32
    %c0_i32_0 = arith.constant 0 : i32
    %c0_i32_1 = arith.constant 0 : i32
    return %c0_i32, %c0_i32_0 : i32, i32
  }
  func.func @transform_7(%arg0: i32) -> (i32, i32) {
    %c0_i32 = arith.constant 0 : i32
    %c0_i32_0 = arith.constant 0 : i32
    %c0_i32_1 = arith.constant 0 : i32
    return %c0_i32, %c0_i32_0 : i32, i32
  }
  func.func @transform_8(%arg0: i32) -> (i32, i32) {
    %c0_i32 = arith.constant 0 : i32
    %c0_i32_0 = arith.constant 0 : i32
    %c0_i32_1 = arith.constant 0 : i32
    return %c0_i32, %c0_i32_0 : i32, i32
  }
  func.func @transform_9(%arg0: i32) -> (i32, i32) {
    %c0_i32 = arith.constant 0 : i32
    %c0_i32_0 = arith.constant 0 : i32
    %c0_i32_1 = arith.constant 0 : i32
    return %c0_i32, %c0_i32_0 : i32, i32
  }
  func.func @transform_10(%arg0: i32) -> (i32, i32) {
    %c0_i32 = arith.constant 0 : i32
    %c0_i32_0 = arith.constant 0 : i32
    %c0_i32_1 = arith.constant 0 : i32
    return %c0_i32, %c0_i32_0 : i32, i32
  }
  func.func @transform_11(%arg0: i32) -> (i32, i32) {
    %c0_i32 = arith.constant 0 : i32
    %c0_i32_0 = arith.constant 0 : i32
    %c0_i32_1 = arith.constant 0 : i32
    return %c0_i32, %c0_i32_0 : i32, i32
  }
  func.func @transform_12(%arg0: i32) -> (i32, i32) {
    %c0_i32 = arith.constant 0 : i32
    %c0_i32_0 = arith.constant 0 : i32
    %c0_i32_1 = arith.constant 0 : i32
    return %c0_i32, %c0_i32_0 : i32, i32
  }
}

</mosaic_0001>

<llo_original>
// kernel: encoder_forward.1
$region0: #{encoder_forward.1}
  #allocation0 [shape = 'u32[]', space=smem, size = 0x4, offset = 0x4, fixed_abs, tag = 'smem constant byte address 0x4 - core index']
  #allocation1 [shape = 'u32[144,128]{1,0:T(1,128)}', space=vmem, size = 0x12000, scoped, tag = 'internal scratch']
  #allocation2 [shape = 'f32[16,32]{1,0:T(8,128)}', space=vmem, size = 0x2000, scoped, tag = 'scratch operand']
  %s0 = inlined_call_operand.hbm [shape: f32[16,8], index: 0, kind: input, shape index: {}]
  %s1 = inlined_call_operand.vmem [shape: f32[2,32], index: 1, kind: input, shape index: {}]
  %s2 = inlined_call_operand.vmem [shape: f32[2,32], index: 2, kind: input, shape index: {}]
  %s3 = inlined_call_operand.hbm [shape: f32[8,128], index: 3, kind: input, shape index: {}]
  %s4 = inlined_call_operand.hbm [shape: f32[32,128], index: 4, kind: input, shape index: {}]
  %s5 = inlined_call_operand.vmem [shape: f32[1,128], index: 5, kind: input, shape index: {}]
  %s6 = inlined_call_operand.hbm [shape: f32[32,32], index: 6, kind: input, shape index: {}]
  %s7 = inlined_call_operand.hbm [shape: f32[1,32], index: 7, kind: input, shape index: {}]
  %s8 = inlined_call_operand.vmem [shape: f32[32,16], index: 8, kind: input, shape index: {}]
  %s9 = inlined_call_operand.vmem [shape: f32[1,16], index: 9, kind: input, shape index: {}]
  %s10 = inlined_call_operand.hbm [shape: f32[16,16], index: 10, kind: output, shape index: {0}]
  %s11 = inlined_call_operand.hbm [shape: f32[2,32], index: 11, kind: output, shape index: {1}]
  %s12 = inlined_call_operand.hbm [shape: f32[2,32], index: 12, kind: output, shape index: {2}]
  %13 = xla_tuple %s10, %s11, %s12
  %s14 = sld [smem:[#allocation0]]
  $region86: #{encoder_forward.1} parent=0
    _
  %s16 = ssub.s32 1, %s14
  %s17 = scalar_select 0, %s16, %s14
  $region1: #{encoder_forward.1} parent=0
    #allocation3 [shape = 'u8[8192]{0}', space=vmem, size = 0x2000, scoped, tag = 'input window, operand 0, single buffered']
    #allocation4 [shape = 's32[1]{0}', space=sflag, size = 0x4, scoped, tag = 'scoped memory for encoder_forward.1']
    #allocation5 [shape = 's32[1]{0}', space=sflag, size = 0x4, scoped, tag = 'scoped memory for encoder_forward.1']
    #allocation6 [shape = 'u8[4096]{0}', space=vmem, size = 0x1000, scoped, tag = 'input window, operand 3, single buffered']
    #allocation7 [shape = 's32[1]{0}', space=sflag, size = 0x4, scoped, tag = 'scoped memory for encoder_forward.1']
    #allocation8 [shape = 'u8[16384]{0}', space=vmem, size = 0x4000, scoped, tag = 'input window, operand 4, single buffered']
    #allocation9 [shape = 'u8[16384]{0}', space=vmem, size = 0x4000, scoped, tag = 'input window, operand 6, single buffered']
    #allocation10 [shape = 's32[1]{0}', space=sflag, size = 0x4, scoped, tag = 'scoped memory for encoder_forward.1']
    #allocation11 [shape = 'u8[512]{0}', space=vmem, size = 0x400, scoped, tag = 'input window, operand 7, single buffered']
    #allocation12 [shape = 'u8[8192]{0}', space=vmem, size = 0x2000, scoped, tag = 'output window, operand 0, single buffered']
    #allocation13 [shape = 'u8[1024]{0}', space=vmem, size = 0x400, scoped, tag = 'output window, operand 1, single buffered']
    #allocation14 [shape = 's32[1]{0}', space=sflag, size = 0x4, scoped, tag = 'scoped memory for encoder_forward.1']
    #allocation15 [shape = 'u8[1024]{0}', space=vmem, size = 0x400, scoped, tag = 'output window, operand 2, single buffered']
    %18 = vsyncpa [#allocation4], 0
    %19 = vsyncpa [#allocation7], 0
    %20 = vsyncpa [#allocation10], 0
    %21 = vsyncpa [#allocation5], 0
    %22 = vsyncpa [#allocation14], 0
    // Predicated region
    $region2: #{encoder_forward.1} parent=1 // pred_check
      _
    $region3: #{encoder_forward.1} parent=1 // pred_check_branch
      %24 = sbr.rel (0) target = $region5
    $region4: #{encoder_forward.1} parent=1 // pred_region
      %s26 = ssub.s32 256, 256
      %27 = vsyncadd [#allocation4], %s26
      %s28 = sshll.u32 [#allocation3], 4
      %s29 = int_to_ptr.vmem [resolvable:$true] %s28
      %34 = dma.hbm_to_vmem [thread:$0]  %s0, 256, %s29, [#allocation4], 128, 128, 8
    $region5: #{encoder_forward.1} parent=1 // pred_fallthru
      _
    // Predicated region
    $region6: #{encoder_forward.1} parent=1 // pred_check
      _
    $region7: #{encoder_forward.1} parent=1 // pred_check_branch
      %36 = sbr.rel (0) target = $region9
    $region8: #{encoder_forward.1} parent=1 // pred_region
      _
    $region9: #{encoder_forward.1} parent=1 // pred_fallthru
      _
    // Predicated region
    $region10: #{encoder_forward.1} parent=1 // pred_check
      _
    $region11: #{encoder_forward.1} parent=1 // pred_check_branch
      %38 = sbr.rel (0) target = $region13
    $region12: #{encoder_forward.1} parent=1 // pred_region
      _
    $region13: #{encoder_forward.1} parent=1 // pred_fallthru
      _
    // Predicated region
    $region14: #{encoder_forward.1} parent=1 // pred_check
      _
    $region15: #{encoder_forward.1} parent=1 // pred_check_branch
      %40 = sbr.rel (0) target = $region17
    $region16: #{encoder_forward.1} parent=1 // pred_region
      %s42 = ssub.s32 128, 128
      %43 = vsyncadd [#allocation7], %s42
      %s45 = sshll.u32 [#allocation6], 4
      %s46 = int_to_ptr.vmem [resolvable:$true] %s45
      %48 = dma.hbm_to_vmem [thread:$0]  %s3, 128, %s46, [#allocation7]
    $region17: #{encoder_forward.1} parent=1 // pred_fallthru
      _
    // Predicated region
    $region18: #{encoder_forward.1} parent=1 // pred_check
      _
    $region19: #{encoder_forward.1} parent=1 // pred_check_branch
      %50 = sbr.rel (0) target = $region21
    $region20: #{encoder_forward.1} parent=1 // pred_region
      %s52 = ssub.s32 512, 512
      %53 = vsyncadd [#allocation7], %s52
      %s54 = sshll.u32 [#allocation8], 4
      %s55 = int_to_ptr.vmem [resolvable:$true] %s54
      %60 = dma.hbm_to_vmem [thread:$0]  %s4, 512, %s55, [#allocation7], 128, 128, 8
    $region21: #{encoder_forward.1} parent=1 // pred_fallthru
      _
    // Predicated region
    $region22: #{encoder_forward.1} parent=1 // pred_check
      _
    $region23: #{encoder_forward.1} parent=1 // pred_check_branch
      %62 = sbr.rel (0) target = $region25
    $region24: #{encoder_forward.1} parent=1 // pred_region
      _
    $region25: #{encoder_forward.1} parent=1 // pred_fallthru
      _
    // Predicated region
    $region26: #{encoder_forward.1} parent=1 // pred_check
      _
    $region27: #{encoder_forward.1} parent=1 // pred_check_branch
      %64 = sbr.rel (0) target = $region29
    $region28: #{encoder_forward.1} parent=1 // pred_region
      %s66 = ssub.s32 512, 512
      %67 = vsyncadd [#allocation10], %s66
      %s68 = sshll.u32 [#allocation9], 4
      %s69 = int_to_ptr.vmem [resolvable:$true] %s68
      %74 = dma.hbm_to_vmem [thread:$0]  %s6, 512, %s69, [#allocation10], 128, 128, 8
    $region29: #{encoder_forward.1} parent=1 // pred_fallthru
      _
    // Predicated region
    $region30: #{encoder_forward.1} parent=1 // pred_check
      _
    $region31: #{encoder_forward.1} parent=1 // pred_check_branch
      %76 = sbr.rel (0) target = $region33
    $region32: #{encoder_forward.1} parent=1 // pred_region
      %s78 = ssub.s32 16, 16
      %79 = vsyncadd [#allocation10], %s78
      %s81 = sshll.u32 [#allocation11], 4
      %s82 = int_to_ptr.vmem [resolvable:$true] %s81
      %84 = dma.hbm_to_vmem [thread:$0]  %s7, 16, %s82, [#allocation10]
    $region33: #{encoder_forward.1} parent=1 // pred_fallthru
      _
    // Predicated region
    $region34: #{encoder_forward.1} parent=1 // pred_check
      _
    $region35: #{encoder_forward.1} parent=1 // pred_check_branch
      %86 = sbr.rel (0) target = $region37
    $region36: #{encoder_forward.1} parent=1 // pred_region
      _
    $region37: #{encoder_forward.1} parent=1 // pred_fallthru
      _
    // Predicated region
    $region38: #{encoder_forward.1} parent=1 // pred_check
      _
    $region39: #{encoder_forward.1} parent=1 // pred_check_branch
      %88 = sbr.rel (0) target = $region41
    $region40: #{encoder_forward.1} parent=1 // pred_region
      _
    $region41: #{encoder_forward.1} parent=1 // pred_fallthru
      _
    // Predicated region
    $region42: #{encoder_forward.1} parent=1 // pred_check
      _
    $region43: #{encoder_forward.1} parent=1 // pred_check_branch
      %90 = sbr.rel (0) target = $region45
    $region44: #{encoder_forward.1} parent=1 // pred_region
      %91 = dma.done [#allocation4], 256
    $region45: #{encoder_forward.1} parent=1 // pred_fallthru
      _
    // Predicated region
    $region46: #{encoder_forward.1} parent=1 // pred_check
      _
    $region47: #{encoder_forward.1} parent=1 // pred_check_branch
      %93 = sbr.rel (0) target = $region49
    $region48: #{encoder_forward.1} parent=1 // pred_region
      %94 = dma.done [#allocation7], 128
    $region49: #{encoder_forward.1} parent=1 // pred_fallthru
      _
    // Predicated region
    $region50: #{encoder_forward.1} parent=1 // pred_check
      _
    $region51: #{encoder_forward.1} parent=1 // pred_check_branch
      %96 = sbr.rel (0) target = $region53
    $region52: #{encoder_forward.1} parent=1 // pred_region
      %97 = dma.done [#allocation7], 512
    $region53: #{encoder_forward.1} parent=1 // pred_fallthru
      _
    // Predicated region
    $region54: #{encoder_forward.1} parent=1 // pred_check
      _
    $region55: #{encoder_forward.1} parent=1 // pred_check_branch
      %99 = sbr.rel (0) target = $region57
    $region56: #{encoder_forward.1} parent=1 // pred_region
      %100 = dma.done [#allocation10], 512
    $region57: #{encoder_forward.1} parent=1 // pred_fallthru
      _
    // Predicated region
    $region58: #{encoder_forward.1} parent=1 // pred_check
      _
    $region59: #{encoder_forward.1} parent=1 // pred_check_branch
      %102 = sbr.rel (0) target = $region61
    $region60: #{encoder_forward.1} parent=1 // pred_region
      %103 = dma.done [#allocation10], 16
    $region61: #{encoder_forward.1} parent=1 // pred_fallthru
      _
    %v104 = vld [vmem:[#allocation3] sm:$0xff]
    %v105 = vld [vmem:[#allocation3 + $0x8] sm:$0xff]
    %v106 = vld [vmem:[#allocation6] sm:$0xff]
    %v107 = vld [vmem:[%s5] sm:$0x1]
    %v109 = vlaneseq
    %v110 = vshrl.u32 %v109, 7
    %v111 = vsub.s32 0, %v110
    %v112 = vrot.slane %v107, %v111
    %vm114 = vcmask 64512
    %v116 = vsel %vm114, %v104, 0
    %v119 = vsel %vm114, %v105, 0
    %121 = vmatprep.subr.mxu0 0.0
    %122 = vmatpush1.msra.mxu0 %v106
    %123 = vmatprep.subr.mxu0 0.0
    %124 = vmatpush1.msra.mxu0 0.0
    %125 = vmatprep.subr.mxu0 0.0
    %126 = vmatpush1.msra.mxu0 0.0
    %127 = vmatprep.subr.mxu0 0.0
    %128 = vmatpush1.msra.mxu0 0.0
    %129 = vmatprep.subr.mxu0 0.0
    %130 = vmatpush1.msra.mxu0 0.0
    %131 = vmatprep.subr.mxu0 0.0
    %132 = vmatpush1.msra.mxu0 0.0
    %133 = vmatprep.subr.mxu0 0.0
    %134 = vmatpush1.msra.mxu0 0.0
    %135 = vmatprep.subr.mxu0 0.0
    %136 = vmatpush1.msra.mxu0 0.0
    %137 = vmatprep.subr.mxu0 0.0
    %138 = vmatpush1.msra.mxu0 0.0
    %139 = vmatprep.subr.mxu0 0.0
    %140 = vmatpush1.msra.mxu0 0.0
    %141 = vmatprep.subr.mxu0 0.0
    %142 = vmatpush1.msra.mxu0 0.0
    %143 = vmatprep.subr.mxu0 0.0
    %144 = vmatpush1.msra.mxu0 0.0
    %145 = vmatprep.subr.mxu0 0.0
    %146 = vmatpush1.msra.mxu0 0.0
    %147 = vmatprep.subr.mxu0 0.0
    %148 = vmatpush1.msra.mxu0 0.0
    %149 = vmatprep.subr.mxu0 0.0
    %150 = vmatpush1.msra.mxu0 0.0
    %151 = vmatprep.subr.mxu0 0.0
    %152 = vmatpush1.msra.mxu0 0.0
    %153 = vmatprep.subr.mxu0 0.0
    %154 = vmatpush1.msra.mxu0 0.0
    %155 = vmatprep.subr.mxu0 0.0
    %156 = vmatpush1.msra.mxu0 0.0
    %157 = vmatprep.subr.mxu0 0.0
    %158 = vmatpush1.msra.mxu0 0.0
    %159 = vmatprep.subr.mxu0 0.0
    %160 = vmatpush1.msra.mxu0 0.0
    %161 = vmatprep.subr.mxu0 0.0
    %162 = vmatpush1.msra.mxu0 0.0
    %163 = vmatprep.subr.mxu0 0.0
    %164 = vmatpush1.msra.mxu0 0.0
    %165 = vmatprep.subr.mxu0 0.0
    %166 = vmatpush1.msra.mxu0 0.0
    %167 = vmatprep.subr.mxu0 0.0
    %168 = vmatpush1.msra.mxu0 0.0
    %169 = vmatprep.subr.mxu0 0.0
    %170 = vmatpush1.msra.mxu0 0.0
    %171 = vmatprep.subr.mxu0 0.0
    %172 = vmatpush1.msra.mxu0 0.0
    %173 = vmatprep.subr.mxu0 0.0
    %174 = vmatpush1.msra.mxu0 0.0
    %175 = vmatprep.subr.mxu0 0.0
    %176 = vmatpush1.msra.mxu0 0.0
    %177 = vmatprep.subr.mxu0 0.0
    %178 = vmatpush1.msra.mxu0 0.0
    %179 = vmatprep.subr.mxu0 0.0
    %180 = vmatpush1.msra.mxu0 0.0
    %181 = vmatprep.subr.mxu0 0.0
    %182 = vmatpush1.msra.mxu0 0.0
    %183 = vmatprep.subr.mxu0 0.0
    %184 = vmatpush1.msra.mxu0 0.0
    %185 = vmatprep.mubr.f32.mxu0 0.0
    %186 = vmatmul.mubr.f32.gmra.mrb[0].mxu0 %v116
    %v187 = vpop.f32.mrb[0].mxu0
    %v188 = vadd.f32 %v112, %v187
    %v189 = vpop.f32.mrb[0].mxu0
    %190 = vmatprep.mubr.f32.mxu0 0.0
    %191 = vmatmul.mubr.f32.gmra.mrb[0].mxu0 %v119
    %v192 = vpop.f32.mrb[0].mxu0
    %v193 = vadd.f32 %v112, %v192
    %v194 = vpop.f32.mrb[0].mxu0
    %195 = vdwg.mxu0
    %v196 = vld [vmem:[#allocation8] sm:$0xff]
    %v197 = vld [vmem:[#allocation8 + $0x8] sm:$0xff]
    %v198 = vld [vmem:[#allocation8 + $0x10] sm:$0xff]
    %v199 = vld [vmem:[#allocation8 + $0x18] sm:$0xff]
    %v200 = vld [vmem:[%s1] sm:$0x3]
    %v201 = vld [vmem:[%s2] sm:$0x3]
    %vm202 = vcmask 261120
    %v204 = vsel %vm202, %v200, 0
    %206 = vmatprep.subr.mxu0 0.0
    %207 = vmatpush1.msra.mxu0 %v196
    %208 = vmatprep.subr.mxu0 0.0
    %209 = vmatpush1.msra.mxu0 %v197
    %210 = vmatprep.subr.mxu0 0.0
    %211 = vmatpush1.msra.mxu0 %v198
    %212 = vmatprep.subr.mxu0 0.0
    %213 = vmatpush1.msra.mxu0 %v199
    %214 = vmatprep.subr.mxu0 0.0
    %215 = vmatpush1.msra.mxu0 0.0
    %216 = vmatprep.subr.mxu0 0.0
    %217 = vmatpush1.msra.mxu0 0.0
    %218 = vmatprep.subr.mxu0 0.0
    %219 = vmatpush1.msra.mxu0 0.0
    %220 = vmatprep.subr.mxu0 0.0
    %221 = vmatpush1.msra.mxu0 0.0
    %222 = vmatprep.subr.mxu0 0.0
    %223 = vmatpush1.msra.mxu0 0.0
    %224 = vmatprep.subr.mxu0 0.0
    %225 = vmatpush1.msra.mxu0 0.0
    %226 = vmatprep.subr.mxu0 0.0
    %227 = vmatpush1.msra.mxu0 0.0
    %228 = vmatprep.subr.mxu0 0.0
    %229 = vmatpush1.msra.mxu0 0.0
    %230 = vmatprep.subr.mxu0 0.0
    %231 = vmatpush1.msra.mxu0 0.0
    %232 = vmatprep.subr.mxu0 0.0
    %233 = vmatpush1.msra.mxu0 0.0
    %234 = vmatprep.subr.mxu0 0.0
    %235 = vmatpush1.msra.mxu0 0.0
    %236 = vmatprep.subr.mxu0 0.0
    %237 = vmatpush1.msra.mxu0 0.0
    %238 = vmatprep.subr.mxu0 0.0
    %239 = vmatpush1.msra.mxu0 0.0
    %240 = vmatprep.subr.mxu0 0.0
    %241 = vmatpush1.msra.mxu0 0.0
    %242 = vmatprep.subr.mxu0 0.0
    %243 = vmatpush1.msra.mxu0 0.0
    %244 = vmatprep.subr.mxu0 0.0
    %245 = vmatpush1.msra.mxu0 0.0
    %246 = vmatprep.subr.mxu0 0.0
    %247 = vmatpush1.msra.mxu0 0.0
    %248 = vmatprep.subr.mxu0 0.0
    %249 = vmatpush1.msra.mxu0 0.0
    %250 = vmatprep.subr.mxu0 0.0
    %251 = vmatpush1.msra.mxu0 0.0
    %252 = vmatprep.subr.mxu0 0.0
    %253 = vmatpush1.msra.mxu0 0.0
    %254 = vmatprep.subr.mxu0 0.0
    %255 = vmatpush1.msra.mxu0 0.0
    %256 = vmatprep.subr.mxu0 0.0
    %257 = vmatpush1.msra.mxu0 0.0
    %258 = vmatprep.subr.mxu0 0.0
    %259 = vmatpush1.msra.mxu0 0.0
    %260 = vmatprep.subr.mxu0 0.0
    %261 = vmatpush1.msra.mxu0 0.0
    %262 = vmatprep.subr.mxu0 0.0
    %263 = vmatpush1.msra.mxu0 0.0
    %264 = vmatprep.subr.mxu0 0.0
    %265 = vmatpush1.msra.mxu0 0.0
    %266 = vmatprep.subr.mxu0 0.0
    %267 = vmatpush1.msra.mxu0 0.0
    %268 = vmatprep.subr.mxu0 0.0
    %269 = vmatpush1.msra.mxu0 0.0
    %270 = vmatprep.mubr.f32.mxu0 0.0
    %271 = vmatmul.mubr.f32.gmra.mrb[0].mxu0 %v204
    %v272 = vpop.f32.mrb[0].mxu0
    %v273 = vadd.f32 0.0, %v272
    %v274 = vpop.f32.mrb[0].mxu0
    %275 = vdwg.mxu0
    %v276 = vadd.f32 %v188, %v273
    %v277 = vxor.u32 %v276, 2147483648
    %v278 = vmul.f32 %v277, 1.442695
    %v279 = vpow.pop %v278
    %v280 = vadd.f32 %v279, 1.0
    %v281 = vrcp.pop %v280
    %v282 = vmul.f32 1.0, %v281
    %v283 = vtanh.pop %v276
    %285 = vrot.lane.b32.xlu0 %v201, 32
    %v286 = vpop.permute.xlu0 %285
    %v288 = vmul.f32 %v282, %v286
    %290 = vrot.lane.b32.xlu0 %v283, 64
    %v291 = vpop.permute.xlu0 %290
    %v293 = vmul.f32 %v282, %v291
    %295 = vrot.lane.b32.xlu0 %v293, 32
    %v296 = vpop.permute.xlu0 %295
    %v298 = vadd.f32 %v288, %v296
    %v299 = vtanh.pop %v298
    %301 = vrot.lane.b32.xlu0 %v299, 64
    %v302 = vpop.permute.xlu0 %301
    %v304 = vmul.f32 %v282, %v302
    %306 = vrot.lane.b32.xlu0 %v304, 32
    %v307 = vpop.permute.xlu0 %306
    %vm309 = vcmask 254976
    %310 = vst.msk [vmem:[#allocation2] sm:$0x3] %vm309, %v307
    %v311 = vsel %vm202, %v307, 0
    %313 = vmatprep.subr.mxu0 0.0
    %314 = vmatpush1.msra.mxu0 %v196
    %315 = vmatprep.subr.mxu0 0.0
    %316 = vmatpush1.msra.mxu0 %v197
    %317 = vmatprep.subr.mxu0 0.0
    %318 = vmatpush1.msra.mxu0 %v198
    %319 = vmatprep.subr.mxu0 0.0
    %320 = vmatpush1.msra.mxu0 %v199
    %321 = vmatprep.subr.mxu0 0.0
    %322 = vmatpush1.msra.mxu0 0.0
    %323 = vmatprep.subr.mxu0 0.0
    %324 = vmatpush1.msra.mxu0 0.0
    %325 = vmatprep.subr.mxu0 0.0
    %326 = vmatpush1.msra.mxu0 0.0
    %327 = vmatprep.subr.mxu0 0.0
    %328 = vmatpush1.msra.mxu0 0.0
    %329 = vmatprep.subr.mxu0 0.0
    %330 = vmatpush1.msra.mxu0 0.0
    %331 = vmatprep.subr.mxu0 0.0
    %332 = vmatpush1.msra.mxu0 0.0
    %333 = vmatprep.subr.mxu0 0.0
    %334 = vmatpush1.msra.mxu0 0.0
    %335 = vmatprep.subr.mxu0 0.0
    %336 = vmatpush1.msra.mxu0 0.0
    %337 = vmatprep.subr.mxu0 0.0
    %338 = vmatpush1.msra.mxu0 0.0
    %339 = vmatprep.subr.mxu0 0.0
    %340 = vmatpush1.msra.mxu0 0.0
    %341 = vmatprep.subr.mxu0 0.0
    %342 = vmatpush1.msra.mxu0 0.0
    %343 = vmatprep.subr.mxu0 0.0
    %344 = vmatpush1.msra.mxu0 0.0
    %345 = vmatprep.subr.mxu0 0.0
    %346 = vmatpush1.msra.mxu0 0.0
    %347 = vmatprep.subr.mxu0 0.0
    %348 = vmatpush1.msra.mxu0 0.0
    %349 = vmatprep.subr.mxu0 0.0
    %350 = vmatpush1.msra.mxu0 0.0
    %351 = vmatprep.subr.mxu0 0.0
    %352 = vmatpush1.msra.mxu0 0.0
    %353 = vmatprep.subr.mxu0 0.0
    %354 = vmatpush1.msra.mxu0 0.0
    %355 = vmatprep.subr.mxu0 0.0
    %356 = vmatpush1.msra.mxu0 0.0
    %357 = vmatprep.subr.mxu0 0.0
    %358 = vmatpush1.msra.mxu0 0.0
    %359 = vmatprep.subr.mxu0 0.0
    %360 = vmatpush1.msra.mxu0 0.0
    %361 = vmatprep.subr.mxu0 0.0
    %362 = vmatpush1.msra.mxu0 0.0
    %363 = vmatprep.subr.mxu0 0.0
    %364 = vmatpush1.msra.mxu0 0.0
    %365 = vmatprep.subr.mxu0 0.0
    %366 = vmatpush1.msra.mxu0 0.0
    %367 = vmatprep.subr.mxu0 0.0
    %368 = vmatpush1.msra.mxu0 0.0
    %369 = vmatprep.subr.mxu0 0.0
    %370 = vmatpush1.msra.mxu0 0.0
    %371 = vmatprep.subr.mxu0 0.0
    %372 = vmatpush1.msra.mxu0 0.0
    %373 = vmatprep.subr.mxu0 0.0
    %374 = vmatpush1.msra.mxu0 0.0
    %375 = vmatprep.subr.mxu0 0.0
    %376 = vmatpush1.msra.mxu0 0.0
    %377 = vmatprep.mubr.f32.mxu0 0.0
    %378 = vmatmul.mubr.f32.gmra.mrb[0].mxu0 %v311
    %v379 = vpop.f32.mrb[0].mxu0
    %v380 = vadd.f32 0.0, %v379
    %v381 = vpop.f32.mrb[0].mxu0
    %382 = vdwg.mxu0
    %v384 = vrot.slane %v380, 6
    %v386 = vadd.f32 %v188, %v384
    %v387 = vxor.u32 %v386, 2147483648
    %v388 = vmul.f32 %v387, 1.442695
    %v389 = vpow.pop %v388
    %v390 = vadd.f32 %v389, 1.0
    %v391 = vrcp.pop %v390
    %v392 = vmul.f32 1.0, %v391
    %v393 = vtanh.pop %v386
    %v395 = vrot.slane %v298, 6
    %v397 = vmul.f32 %v392, %v395
    %399 = vrot.lane.b32.xlu0 %v393, 64
    %v400 = vpop.permute.xlu0 %399
    %v402 = vmul.f32 %v392, %v400
    %404 = vrot.lane.b32.xlu0 %v402, 32
    %v405 = vpop.permute.xlu0 %404
    %v407 = vadd.f32 %v397, %v405
    %v408 = vtanh.pop %v407
    %410 = vrot.lane.b32.xlu0 %v408, 64
    %v411 = vpop.permute.xlu0 %410
    %v413 = vmul.f32 %v392, %v411
    %415 = vrot.lane.b32.xlu0 %v413, 32
    %v416 = vpop.permute.xlu0 %415
    %vm418 = vcmask 257026
    %419 = vst.msk [vmem:[#allocation2] sm:$0xc] %vm418, %v416
    %v420 = vrot.slane %v413, 2
    %421 = vrot.lane.b32.xlu0 %v420, 32
    %v422 = vpop.permute.xlu0 %421
    %v423 = vsel %vm202, %v422, 0
    %425 = vmatprep.subr.mxu0 0.0
    %426 = vmatpush1.msra.mxu0 %v196
    %427 = vmatprep.subr.mxu0 0.0
    %428 = vmatpush1.msra.mxu0 %v197
    %429 = vmatprep.subr.mxu0 0.0
    %430 = vmatpush1.msra.mxu0 %v198
    %431 = vmatprep.subr.mxu0 0.0
    %432 = vmatpush1.msra.mxu0 %v199
    %433 = vmatprep.subr.mxu0 0.0
    %434 = vmatpush1.msra.mxu0 0.0
    %435 = vmatprep.subr.mxu0 0.0
    %436 = vmatpush1.msra.mxu0 0.0
    %437 = vmatprep.subr.mxu0 0.0
    %438 = vmatpush1.msra.mxu0 0.0
    %439 = vmatprep.subr.mxu0 0.0
    %440 = vmatpush1.msra.mxu0 0.0
    %441 = vmatprep.subr.mxu0 0.0
    %442 = vmatpush1.msra.mxu0 0.0
    %443 = vmatprep.subr.mxu0 0.0
    %444 = vmatpush1.msra.mxu0 0.0
    %445 = vmatprep.subr.mxu0 0.0
    %446 = vmatpush1.msra.mxu0 0.0
    %447 = vmatprep.subr.mxu0 0.0
    %448 = vmatpush1.msra.mxu0 0.0
    %449 = vmatprep.subr.mxu0 0.0
    %450 = vmatpush1.msra.mxu0 0.0
    %451 = vmatprep.subr.mxu0 0.0
    %452 = vmatpush1.msra.mxu0 0.0
    %453 = vmatprep.subr.mxu0 0.0
    %454 = vmatpush1.msra.mxu0 0.0
    %455 = vmatprep.subr.mxu0 0.0
    %456 = vmatpush1.msra.mxu0 0.0
    %457 = vmatprep.subr.mxu0 0.0
    %458 = vmatpush1.msra.mxu0 0.0
    %459 = vmatprep.subr.mxu0 0.0
    %460 = vmatpush1.msra.mxu0 0.0
    %461 = vmatprep.subr.mxu0 0.0
    %462 = vmatpush1.msra.mxu0 0.0
    %463 = vmatprep.subr.mxu0 0.0
    %464 = vmatpush1.msra.mxu0 0.0
    %465 = vmatprep.subr.mxu0 0.0
    %466 = vmatpush1.msra.mxu0 0.0
    %467 = vmatprep.subr.mxu0 0.0
    %468 = vmatpush1.msra.mxu0 0.0
    %469 = vmatprep.subr.mxu0 0.0
    %470 = vmatpush1.msra.mxu0 0.0
    %471 = vmatprep.subr.mxu0 0.0
    %472 = vmatpush1.msra.mxu0 0.0
    %473 = vmatprep.subr.mxu0 0.0
    %474 = vmatpush1.msra.mxu0 0.0
    %475 = vmatprep.subr.mxu0 0.0
    %476 = vmatpush1.msra.mxu0 0.0
    %477 = vmatprep.subr.mxu0 0.0
    %478 = vmatpush1.msra.mxu0 0.0
    %479 = vmatprep.subr.mxu0 0.0
    %480 = vmatpush1.msra.mxu0 0.0
    %481 = vmatprep.subr.mxu0 0.0
    %482 = vmatpush1.msra.mxu0 0.0
    %483 = vmatprep.subr.mxu0 0.0
    %484 = vmatpush1.msra.mxu0 0.0
    %485 = vmatprep.subr.mxu0 0.0
    %486 = vmatpush1.msra.mxu0 0.0
    %487 = vmatprep.subr.mxu0 0.0
    %488 = vmatpush1.msra.mxu0 0.0
    %489 = vmatprep.mubr.f32.mxu0 0.0
    %490 = vmatmul.mubr.f32.gmra.mrb[0].mxu0 %v423
    %v491 = vpop.f32.mrb[0].mxu0
    %v492 = vadd.f32 0.0, %v491
    %v493 = vpop.f32.mrb[0].mxu0
    %494 = vdwg.mxu0
    %v496 = vrot.slane %v492, 4
    %v498 = vadd.f32 %v188, %v496
    %v499 = vxor.u32 %v498, 2147483648
    %v500 = vmul.f32 %v499, 1.442695
    %v501 = vpow.pop %v500
    %v502 = vadd.f32 %v501, 1.0
    %v503 = vrcp.pop %v502
    %v504 = vmul.f32 1.0, %v503
    %v505 = vtanh.pop %v498
    %v507 = vrot.slane %v407, 6
    %v509 = vmul.f32 %v504, %v507
    %511 = vrot.lane.b32.xlu0 %v505, 64
    %v512 = vpop.permute.xlu0 %511
    %v514 = vmul.f32 %v504, %v512
    %516 = vrot.lane.b32.xlu0 %v514, 32
    %v517 = vpop.permute.xlu0 %516
    %v519 = vadd.f32 %v509, %v517
    %v520 = vtanh.pop %v519
    %522 = vrot.lane.b32.xlu0 %v520, 64
    %v523 = vpop.permute.xlu0 %522
    %v525 = vmul.f32 %v504, %v523
    %527 = vrot.lane.b32.xlu0 %v525, 32
    %v528 = vpop.permute.xlu0 %527
    %vm530 = vcmask 259076
    %531 = vst.msk [vmem:[#allocation2] sm:$0x30] %vm530, %v528
    %v532 = vrot.slane %v525, 4
    %533 = vrot.lane.b32.xlu0 %v532, 32
    %v534 = vpop.permute.xlu0 %533
    %v535 = vsel %vm202, %v534, 0
    %537 = vmatprep.subr.mxu0 0.0
    %538 = vmatpush1.msra.mxu0 %v196
    %539 = vmatprep.subr.mxu0 0.0
    %540 = vmatpush1.msra.mxu0 %v197
    %541 = vmatprep.subr.mxu0 0.0
    %542 = vmatpush1.msra.mxu0 %v198
    %543 = vmatprep.subr.mxu0 0.0
    %544 = vmatpush1.msra.mxu0 %v199
    %545 = vmatprep.subr.mxu0 0.0
    %546 = vmatpush1.msra.mxu0 0.0
    %547 = vmatprep.subr.mxu0 0.0
    %548 = vmatpush1.msra.mxu0 0.0
    %549 = vmatprep.subr.mxu0 0.0
    %550 = vmatpush1.msra.mxu0 0.0
    %551 = vmatprep.subr.mxu0 0.0
    %552 = vmatpush1.msra.mxu0 0.0
    %553 = vmatprep.subr.mxu0 0.0
    %554 = vmatpush1.msra.mxu0 0.0
    %555 = vmatprep.subr.mxu0 0.0
    %556 = vmatpush1.msra.mxu0 0.0
    %557 = vmatprep.subr.mxu0 0.0
    %558 = vmatpush1.msra.mxu0 0.0
    %559 = vmatprep.subr.mxu0 0.0
    %560 = vmatpush1.msra.mxu0 0.0
    %561 = vmatprep.subr.mxu0 0.0
    %562 = vmatpush1.msra.mxu0 0.0
    %563 = vmatprep.subr.mxu0 0.0
    %564 = vmatpush1.msra.mxu0 0.0
    %565 = vmatprep.subr.mxu0 0.0
    %566 = vmatpush1.msra.mxu0 0.0
    %567 = vmatprep.subr.mxu0 0.0
    %568 = vmatpush1.msra.mxu0 0.0
    %569 = vmatprep.subr.mxu0 0.0
    %570 = vmatpush1.msra.mxu0 0.0
    %571 = vmatprep.subr.mxu0 0.0
    %572 = vmatpush1.msra.mxu0 0.0
    %573 = vmatprep.subr.mxu0 0.0
    %574 = vmatpush1.msra.mxu0 0.0
    %575 = vmatprep.subr.mxu0 0.0
    %576 = vmatpush1.msra.mxu0 0.0
    %577 = vmatprep.subr.mxu0 0.0
    %578 = vmatpush1.msra.mxu0 0.0
    %579 = vmatprep.subr.mxu0 0.0
    %580 = vmatpush1.msra.mxu0 0.0
    %581 = vmatprep.subr.mxu0 0.0
    %582 = vmatpush1.msra.mxu0 0.0
    %583 = vmatprep.subr.mxu0 0.0
    %584 = vmatpush1.msra.mxu0 0.0
    %585 = vmatprep.subr.mxu0 0.0
    %586 = vmatpush1.msra.mxu0 0.0
    %587 = vmatprep.subr.mxu0 0.0
    %588 = vmatpush1.msra.mxu0 0.0
    %589 = vmatprep.subr.mxu0 0.0
    %590 = vmatpush1.msra.mxu0 0.0
    %591 = vmatprep.subr.mxu0 0.0
    %592 = vmatpush1.msra.mxu0 0.0
    %593 = vmatprep.subr.mxu0 0.0
    %594 = vmatpush1.msra.mxu0 0.0
    %595 = vmatprep.subr.mxu0 0.0
    %596 = vmatpush1.msra.mxu0 0.0
    %597 = vmatprep.subr.mxu0 0.0
    %598 = vmatpush1.msra.mxu0 0.0
    %599 = vmatprep.subr.mxu0 0.0
    %600 = vmatpush1.msra.mxu0 0.0
    %601 = vmatprep.mubr.f32.mxu0 0.0
    %602 = vmatmul.mubr.f32.gmra.mrb[0].mxu0 %v535
    %v603 = vpop.f32.mrb[0].mxu0
    %v604 = vadd.f32 0.0, %v603
    %v605 = vpop.f32.mrb[0].mxu0
    %606 = vdwg.mxu0
    %v608 = vrot.slane %v604, 2
    %v610 = vadd.f32 %v188, %v608
    %v611 = vxor.u32 %v610, 2147483648
    %v612 = vmul.f32 %v611, 1.442695
    %v613 = vpow.pop %v612
    %v614 = vadd.f32 %v613, 1.0
    %v615 = vrcp.pop %v614
    %v616 = vmul.f32 1.0, %v615
    %v617 = vtanh.pop %v610
    %v619 = vrot.slane %v519, 6
    %v621 = vmul.f32 %v616, %v619
    %623 = vrot.lane.b32.xlu0 %v617, 64
    %v624 = vpop.permute.xlu0 %623
    %v626 = vmul.f32 %v616, %v624
    %628 = vrot.lane.b32.xlu0 %v626, 32
    %v629 = vpop.permute.xlu0 %628
    %v631 = vadd.f32 %v621, %v629
    %v632 = vtanh.pop %v631
    %634 = vrot.lane.b32.xlu0 %v632, 64
    %v635 = vpop.permute.xlu0 %634
    %v637 = vmul.f32 %v616, %v635
    %639 = vrot.lane.b32.xlu0 %v637, 32
    %v640 = vpop.permute.xlu0 %639
    %vm642 = vcmask 261126
    %643 = vst.msk [vmem:[#allocation2] sm:$0xc0] %vm642, %v640
    %v644 = vrot.slane %v637, 6
    %645 = vrot.lane.b32.xlu0 %v644, 32
    %v646 = vpop.permute.xlu0 %645
    %v647 = vsel %vm202, %v646, 0
    %649 = vmatprep.subr.mxu0 0.0
    %650 = vmatpush1.msra.mxu0 %v196
    %651 = vmatprep.subr.mxu0 0.0
    %652 = vmatpush1.msra.mxu0 %v197
    %653 = vmatprep.subr.mxu0 0.0
    %654 = vmatpush1.msra.mxu0 %v198
    %655 = vmatprep.subr.mxu0 0.0
    %656 = vmatpush1.msra.mxu0 %v199
    %657 = vmatprep.subr.mxu0 0.0
    %658 = vmatpush1.msra.mxu0 0.0
    %659 = vmatprep.subr.mxu0 0.0
    %660 = vmatpush1.msra.mxu0 0.0
    %661 = vmatprep.subr.mxu0 0.0
    %662 = vmatpush1.msra.mxu0 0.0
    %663 = vmatprep.subr.mxu0 0.0
    %664 = vmatpush1.msra.mxu0 0.0
    %665 = vmatprep.subr.mxu0 0.0
    %666 = vmatpush1.msra.mxu0 0.0
    %667 = vmatprep.subr.mxu0 0.0
    %668 = vmatpush1.msra.mxu0 0.0
    %669 = vmatprep.subr.mxu0 0.0
    %670 = vmatpush1.msra.mxu0 0.0
    %671 = vmatprep.subr.mxu0 0.0
    %672 = vmatpush1.msra.mxu0 0.0
    %673 = vmatprep.subr.mxu0 0.0
    %674 = vmatpush1.msra.mxu0 0.0
    %675 = vmatprep.subr.mxu0 0.0
    %676 = vmatpush1.msra.mxu0 0.0
    %677 = vmatprep.subr.mxu0 0.0
    %678 = vmatpush1.msra.mxu0 0.0
    %679 = vmatprep.subr.mxu0 0.0
    %680 = vmatpush1.msra.mxu0 0.0
    %681 = vmatprep.subr.mxu0 0.0
    %682 = vmatpush1.msra.mxu0 0.0
    %683 = vmatprep.subr.mxu0 0.0
    %684 = vmatpush1.msra.mxu0 0.0
    %685 = vmatprep.subr.mxu0 0.0
    %686 = vmatpush1.msra.mxu0 0.0
    %687 = vmatprep.subr.mxu0 0.0
    %688 = vmatpush1.msra.mxu0 0.0
    %689 = vmatprep.subr.mxu0 0.0
    %690 = vmatpush1.msra.mxu0 0.0
    %691 = vmatprep.subr.mxu0 0.0
    %692 = vmatpush1.msra.mxu0 0.0
    %693 = vmatprep.subr.mxu0 0.0
    %694 = vmatpush1.msra.mxu0 0.0
    %695 = vmatprep.subr.mxu0 0.0
    %696 = vmatpush1.msra.mxu0 0.0
    %697 = vmatprep.subr.mxu0 0.0
    %698 = vmatpush1.msra.mxu0 0.0
    %699 = vmatprep.subr.mxu0 0.0
    %700 = vmatpush1.msra.mxu0 0.0
    %701 = vmatprep.subr.mxu0 0.0
    %702 = vmatpush1.msra.mxu0 0.0
    %703 = vmatprep.subr.mxu0 0.0
    %704 = vmatpush1.msra.mxu0 0.0
    %705 = vmatprep.subr.mxu0 0.0
    %706 = vmatpush1.msra.mxu0 0.0
    %707 = vmatprep.subr.mxu0 0.0
    %708 = vmatpush1.msra.mxu0 0.0
    %709 = vmatprep.subr.mxu0 0.0
    %710 = vmatpush1.msra.mxu0 0.0
    %711 = vmatprep.subr.mxu0 0.0
    %712 = vmatpush1.msra.mxu0 0.0
    %713 = vmatprep.mubr.f32.mxu0 0.0
    %714 = vmatmul.mubr.f32.gmra.mrb[0].mxu0 %v647
    %v715 = vpop.f32.mrb[0].mxu0
    %v716 = vadd.f32 0.0, %v715
    %v717 = vpop.f32.mrb[0].mxu0
    %718 = vdwg.mxu0
    %v719 = vadd.f32 %v193, %v716
    %v720 = vxor.u32 %v719, 2147483648
    %v721 = vmul.f32 %v720, 1.442695
    %v722 = vpow.pop %v721
    %v723 = vadd.f32 %v722, 1.0
    %v724 = vrcp.pop %v723
    %v725 = vmul.f32 1.0, %v724
    %v726 = vtanh.pop %v719
    %v728 = vrot.slane %v631, 6
    %v730 = vmul.f32 %v725, %v728
    %732 = vrot.lane.b32.xlu0 %v726, 64
    %v733 = vpop.permute.xlu0 %732
    %v735 = vmul.f32 %v725, %v733
    %737 = vrot.lane.b32.xlu0 %v735, 32
    %v738 = vpop.permute.xlu0 %737
    %v740 = vadd.f32 %v730, %v738
    %v741 = vtanh.pop %v740
    %743 = vrot.lane.b32.xlu0 %v741, 64
    %v744 = vpop.permute.xlu0 %743
    %v746 = vmul.f32 %v725, %v744
    %748 = vrot.lane.b32.xlu0 %v746, 32
    %v749 = vpop.permute.xlu0 %748
    %751 = vst.msk [vmem:[#allocation2 + $0x8] sm:$0x3] %vm309, %v749
    %v752 = vsel %vm202, %v749, 0
    %754 = vmatprep.subr.mxu0 0.0
    %755 = vmatpush1.msra.mxu0 %v196
    %756 = vmatprep.subr.mxu0 0.0
    %757 = vmatpush1.msra.mxu0 %v197
    %758 = vmatprep.subr.mxu0 0.0
    %759 = vmatpush1.msra.mxu0 %v198
    %760 = vmatprep.subr.mxu0 0.0
    %761 = vmatpush1.msra.mxu0 %v199
    %762 = vmatprep.subr.mxu0 0.0
    %763 = vmatpush1.msra.mxu0 0.0
    %764 = vmatprep.subr.mxu0 0.0
    %765 = vmatpush1.msra.mxu0 0.0
    %766 = vmatprep.subr.mxu0 0.0
    %767 = vmatpush1.msra.mxu0 0.0
    %768 = vmatprep.subr.mxu0 0.0
    %769 = vmatpush1.msra.mxu0 0.0
    %770 = vmatprep.subr.mxu0 0.0
    %771 = vmatpush1.msra.mxu0 0.0
    %772 = vmatprep.subr.mxu0 0.0
    %773 = vmatpush1.msra.mxu0 0.0
    %774 = vmatprep.subr.mxu0 0.0
    %775 = vmatpush1.msra.mxu0 0.0
    %776 = vmatprep.subr.mxu0 0.0
    %777 = vmatpush1.msra.mxu0 0.0
    %778 = vmatprep.subr.mxu0 0.0
    %779 = vmatpush1.msra.mxu0 0.0
    %780 = vmatprep.subr.mxu0 0.0
    %781 = vmatpush1.msra.mxu0 0.0
    %782 = vmatprep.subr.mxu0 0.0
    %783 = vmatpush1.msra.mxu0 0.0
    %784 = vmatprep.subr.mxu0 0.0
    %785 = vmatpush1.msra.mxu0 0.0
    %786 = vmatprep.subr.mxu0 0.0
    %787 = vmatpush1.msra.mxu0 0.0
    %788 = vmatprep.subr.mxu0 0.0
    %789 = vmatpush1.msra.mxu0 0.0
    %790 = vmatprep.subr.mxu0 0.0
    %791 = vmatpush1.msra.mxu0 0.0
    %792 = vmatprep.subr.mxu0 0.0
    %793 = vmatpush1.msra.mxu0 0.0
    %794 = vmatprep.subr.mxu0 0.0
    %795 = vmatpush1.msra.mxu0 0.0
    %796 = vmatprep.subr.mxu0 0.0
    %797 = vmatpush1.msra.mxu0 0.0
    %798 = vmatprep.subr.mxu0 0.0
    %799 = vmatpush1.msra.mxu0 0.0
    %800 = vmatprep.subr.mxu0 0.0
    %801 = vmatpush1.msra.mxu0 0.0
    %802 = vmatprep.subr.mxu0 0.0
    %803 = vmatpush1.msra.mxu0 0.0
    %804 = vmatprep.subr.mxu0 0.0
    %805 = vmatpush1.msra.mxu0 0.0
    %806 = vmatprep.subr.mxu0 0.0
    %807 = vmatpush1.msra.mxu0 0.0
    %808 = vmatprep.subr.mxu0 0.0
    %809 = vmatpush1.msra.mxu0 0.0
    %810 = vmatprep.subr.mxu0 0.0
    %811 = vmatpush1.msra.mxu0 0.0
    %812 = vmatprep.subr.mxu0 0.0
    %813 = vmatpush1.msra.mxu0 0.0
    %814 = vmatprep.subr.mxu0 0.0
    %815 = vmatpush1.msra.mxu0 0.0
    %816 = vmatprep.subr.mxu0 0.0
    %817 = vmatpush1.msra.mxu0 0.0
    %818 = vmatprep.mubr.f32.mxu0 0.0
    %819 = vmatmul.mubr.f32.gmra.mrb[0].mxu0 %v752
    %v820 = vpop.f32.mrb[0].mxu0
    %v821 = vadd.f32 0.0, %v820
    %v822 = vpop.f32.mrb[0].mxu0
    %823 = vdwg.mxu0
    %v825 = vrot.slane %v821, 6
    %v827 = vadd.f32 %v193, %v825
    %v828 = vxor.u32 %v827, 2147483648
    %v829 = vmul.f32 %v828, 1.442695
    %v830 = vpow.pop %v829
    %v831 = vadd.f32 %v830, 1.0
    %v832 = vrcp.pop %v831
    %v833 = vmul.f32 1.0, %v832
    %v834 = vtanh.pop %v827
    %v836 = vrot.slane %v740, 6
    %v838 = vmul.f32 %v833, %v836
    %840 = vrot.lane.b32.xlu0 %v834, 64
    %v841 = vpop.permute.xlu0 %840
    %v843 = vmul.f32 %v833, %v841
    %845 = vrot.lane.b32.xlu0 %v843, 32
    %v846 = vpop.permute.xlu0 %845
    %v848 = vadd.f32 %v838, %v846
    %v849 = vtanh.pop %v848
    %851 = vrot.lane.b32.xlu0 %v849, 64
    %v852 = vpop.permute.xlu0 %851
    %v854 = vmul.f32 %v833, %v852
    %856 = vrot.lane.b32.xlu0 %v854, 32
    %v857 = vpop.permute.xlu0 %856
    %859 = vst.msk [vmem:[#allocation2 + $0x8] sm:$0xc] %vm418, %v857
    %v860 = vrot.slane %v854, 2
    %861 = vrot.lane.b32.xlu0 %v860, 32
    %v862 = vpop.permute.xlu0 %861
    %v863 = vsel %vm202, %v862, 0
    %865 = vmatprep.subr.mxu0 0.0
    %866 = vmatpush1.msra.mxu0 %v196
    %867 = vmatprep.subr.mxu0 0.0
    %868 = vmatpush1.msra.mxu0 %v197
    %869 = vmatprep.subr.mxu0 0.0
    %870 = vmatpush1.msra.mxu0 %v198
    %871 = vmatprep.subr.mxu0 0.0
    %872 = vmatpush1.msra.mxu0 %v199
    %873 = vmatprep.subr.mxu0 0.0
    %874 = vmatpush1.msra.mxu0 0.0
    %875 = vmatprep.subr.mxu0 0.0
    %876 = vmatpush1.msra.mxu0 0.0
    %877 = vmatprep.subr.mxu0 0.0
    %878 = vmatpush1.msra.mxu0 0.0
    %879 = vmatprep.subr.mxu0 0.0
    %880 = vmatpush1.msra.mxu0 0.0
    %881 = vmatprep.subr.mxu0 0.0
    %882 = vmatpush1.msra.mxu0 0.0
    %883 = vmatprep.subr.mxu0 0.0
    %884 = vmatpush1.msra.mxu0 0.0
    %885 = vmatprep.subr.mxu0 0.0
    %886 = vmatpush1.msra.mxu0 0.0
    %887 = vmatprep.subr.mxu0 0.0
    %888 = vmatpush1.msra.mxu0 0.0
    %889 = vmatprep.subr.mxu0 0.0
    %890 = vmatpush1.msra.mxu0 0.0
    %891 = vmatprep.subr.mxu0 0.0
    %892 = vmatpush1.msra.mxu0 0.0
    %893 = vmatprep.subr.mxu0 0.0
    %894 = vmatpush1.msra.mxu0 0.0
    %895 = vmatprep.subr.mxu0 0.0
    %896 = vmatpush1.msra.mxu0 0.0
    %897 = vmatprep.subr.mxu0 0.0
    %898 = vmatpush1.msra.mxu0 0.0
    %899 = vmatprep.subr.mxu0 0.0
    %900 = vmatpush1.msra.mxu0 0.0
    %901 = vmatprep.subr.mxu0 0.0
    %902 = vmatpush1.msra.mxu0 0.0
    %903 = vmatprep.subr.mxu0 0.0
    %904 = vmatpush1.msra.mxu0 0.0
    %905 = vmatprep.subr.mxu0 0.0
    %906 = vmatpush1.msra.mxu0 0.0
    %907 = vmatprep.subr.mxu0 0.0
    %908 = vmatpush1.msra.mxu0 0.0
    %909 = vmatprep.subr.mxu0 0.0
    %910 = vmatpush1.msra.mxu0 0.0
    %911 = vmatprep.subr.mxu0 0.0
    %912 = vmatpush1.msra.mxu0 0.0
    %913 = vmatprep.subr.mxu0 0.0
    %914 = vmatpush1.msra.mxu0 0.0
    %915 = vmatprep.subr.mxu0 0.0
    %916 = vmatpush1.msra.mxu0 0.0
    %917 = vmatprep.subr.mxu0 0.0
    %918 = vmatpush1.msra.mxu0 0.0
    %919 = vmatprep.subr.mxu0 0.0
    %920 = vmatpush1.msra.mxu0 0.0
    %921 = vmatprep.subr.mxu0 0.0
    %922 = vmatpush1.msra.mxu0 0.0
    %923 = vmatprep.subr.mxu0 0.0
    %924 = vmatpush1.msra.mxu0 0.0
    %925 = vmatprep.subr.mxu0 0.0
    %926 = vmatpush1.msra.mxu0 0.0
    %927 = vmatprep.subr.mxu0 0.0
    %928 = vmatpush1.msra.mxu0 0.0
    %929 = vmatprep.mubr.f32.mxu0 0.0
    %930 = vmatmul.mubr.f32.gmra.mrb[0].mxu0 %v863
    %v931 = vpop.f32.mrb[0].mxu0
    %v932 = vadd.f32 0.0, %v931
    %v933 = vpop.f32.mrb[0].mxu0
    %934 = vdwg.mxu0
    %v936 = vrot.slane %v932, 4
    %v938 = vadd.f32 %v193, %v936
    %v939 = vxor.u32 %v938, 2147483648
    %v940 = vmul.f32 %v939, 1.442695
    %v941 = vpow.pop %v940
    %v942 = vadd.f32 %v941, 1.0
    %v943 = vrcp.pop %v942
    %v944 = vmul.f32 1.0, %v943
    %v945 = vtanh.pop %v938
    %v947 = vrot.slane %v848, 6
    %v949 = vmul.f32 %v944, %v947
    %951 = vrot.lane.b32.xlu0 %v945, 64
    %v952 = vpop.permute.xlu0 %951
    %v954 = vmul.f32 %v944, %v952
    %956 = vrot.lane.b32.xlu0 %v954, 32
    %v957 = vpop.permute.xlu0 %956
    %v959 = vadd.f32 %v949, %v957
    %v960 = vtanh.pop %v959
    %962 = vrot.lane.b32.xlu0 %v960, 64
    %v963 = vpop.permute.xlu0 %962
    %v965 = vmul.f32 %v944, %v963
    %967 = vrot.lane.b32.xlu0 %v965, 32
    %v968 = vpop.permute.xlu0 %967
    %970 = vst.msk [vmem:[#allocation2 + $0x8] sm:$0x30] %vm530, %v968
    %v971 = vrot.slane %v965, 4
    %972 = vrot.lane.b32.xlu0 %v971, 32
    %v973 = vpop.permute.xlu0 %972
    %v974 = vsel %vm202, %v973, 0
    %976 = vmatprep.subr.mxu0 0.0
    %977 = vmatpush1.msra.mxu0 %v196
    %978 = vmatprep.subr.mxu0 0.0
    %979 = vmatpush1.msra.mxu0 %v197
    %980 = vmatprep.subr.mxu0 0.0
    %981 = vmatpush1.msra.mxu0 %v198
    %982 = vmatprep.subr.mxu0 0.0
    %983 = vmatpush1.msra.mxu0 %v199
    %984 = vmatprep.subr.mxu0 0.0
    %985 = vmatpush1.msra.mxu0 0.0
    %986 = vmatprep.subr.mxu0 0.0
    %987 = vmatpush1.msra.mxu0 0.0
    %988 = vmatprep.subr.mxu0 0.0
    %989 = vmatpush1.msra.mxu0 0.0
    %990 = vmatprep.subr.mxu0 0.0
    %991 = vmatpush1.msra.mxu0 0.0
    %992 = vmatprep.subr.mxu0 0.0
    %993 = vmatpush1.msra.mxu0 0.0
    %994 = vmatprep.subr.mxu0 0.0
    %995 = vmatpush1.msra.mxu0 0.0
    %996 = vmatprep.subr.mxu0 0.0
    %997 = vmatpush1.msra.mxu0 0.0
    %998 = vmatprep.subr.mxu0 0.0
    %999 = vmatpush1.msra.mxu0 0.0
    %1000 = vmatprep.subr.mxu0 0.0
    %1001 = vmatpush1.msra.mxu0 0.0
    %1002 = vmatprep.subr.mxu0 0.0
    %1003 = vmatpush1.msra.mxu0 0.0
    %1004 = vmatprep.subr.mxu0 0.0
    %1005 = vmatpush1.msra.mxu0 0.0
    %1006 = vmatprep.subr.mxu0 0.0
    %1007 = vmatpush1.msra.mxu0 0.0
    %1008 = vmatprep.subr.mxu0 0.0
    %1009 = vmatpush1.msra.mxu0 0.0
    %1010 = vmatprep.subr.mxu0 0.0
    %1011 = vmatpush1.msra.mxu0 0.0
    %1012 = vmatprep.subr.mxu0 0.0
    %1013 = vmatpush1.msra.mxu0 0.0
    %1014 = vmatprep.subr.mxu0 0.0
    %1015 = vmatpush1.msra.mxu0 0.0
    %1016 = vmatprep.subr.mxu0 0.0
    %1017 = vmatpush1.msra.mxu0 0.0
    %1018 = vmatprep.subr.mxu0 0.0
    %1019 = vmatpush1.msra.mxu0 0.0
    %1020 = vmatprep.subr.mxu0 0.0
    %1021 = vmatpush1.msra.mxu0 0.0
    %1022 = vmatprep.subr.mxu0 0.0
    %1023 = vmatpush1.msra.mxu0 0.0
    %1024 = vmatprep.subr.mxu0 0.0
    %1025 = vmatpush1.msra.mxu0 0.0
    %1026 = vmatprep.subr.mxu0 0.0
    %1027 = vmatpush1.msra.mxu0 0.0
    %1028 = vmatprep.subr.mxu0 0.0
    %1029 = vmatpush1.msra.mxu0 0.0
    %1030 = vmatprep.subr.mxu0 0.0
    %1031 = vmatpush1.msra.mxu0 0.0
    %1032 = vmatprep.subr.mxu0 0.0
    %1033 = vmatpush1.msra.mxu0 0.0
    %1034 = vmatprep.subr.mxu0 0.0
    %1035 = vmatpush1.msra.mxu0 0.0
    %1036 = vmatprep.subr.mxu0 0.0
    %1037 = vmatpush1.msra.mxu0 0.0
    %1038 = vmatprep.subr.mxu0 0.0
    %1039 = vmatpush1.msra.mxu0 0.0
    %1040 = vmatprep.mubr.f32.mxu0 0.0
    %1041 = vmatmul.mubr.f32.gmra.mrb[0].mxu0 %v974
    %v1042 = vpop.f32.mrb[0].mxu0
    %v1043 = vadd.f32 0.0, %v1042
    %v1044 = vpop.f32.mrb[0].mxu0
    %1045 = vdwg.mxu0
    %v1047 = vrot.slane %v1043, 2
    %v1049 = vadd.f32 %v193, %v1047
    %v1050 = vxor.u32 %v1049, 2147483648
    %v1051 = vmul.f32 %v1050, 1.442695
    %v1052 = vpow.pop %v1051
    %v1053 = vadd.f32 %v1052, 1.0
    %v1054 = vrcp.pop %v1053
    %v1055 = vmul.f32 1.0, %v1054
    %v1056 = vtanh.pop %v1049
    %v1058 = vrot.slane %v959, 6
    %v1060 = vmul.f32 %v1055, %v1058
    %1062 = vrot.lane.b32.xlu0 %v1056, 64
    %v1063 = vpop.permute.xlu0 %1062
    %v1065 = vmul.f32 %v1055, %v1063
    %1067 = vrot.lane.b32.xlu0 %v1065, 32
    %v1068 = vpop.permute.xlu0 %1067
    %v1070 = vadd.f32 %v1060, %v1068
    %v1071 = vtanh.pop %v1070
    %1073 = vrot.lane.b32.xlu0 %v1071, 64
    %v1074 = vpop.permute.xlu0 %1073
    %v1076 = vmul.f32 %v1055, %v1074
    %1078 = vrot.lane.b32.xlu0 %v1076, 32
    %v1079 = vpop.permute.xlu0 %1078
    %1081 = vst.msk [vmem:[#allocation2 + $0x8] sm:$0xc0] %vm642, %v1079
    %v1082 = vld [vmem:[#allocation2] sm:$0xff]
    %v1083 = vld [vmem:[#allocation2 + $0x8] sm:$0xff]
    %v1084 = vld [vmem:[#allocation9] sm:$0xff]
    %v1085 = vld [vmem:[#allocation9 + $0x8] sm:$0xff]
    %v1086 = vld [vmem:[#allocation9 + $0x10] sm:$0xff]
    %v1087 = vld [vmem:[#allocation9 + $0x18] sm:$0xff]
    %v1088 = vld [vmem:[#allocation11] sm:$0x1]
    %v1090 = vlaneseq
    %v1091 = vshrl.u32 %v1090, 7
    %v1092 = vsub.s32 0, %v1091
    %v1093 = vrot.slane %v1088, %v1092
    %v1096 = vsel %vm202, %v1082, 0
    %v1099 = vsel %vm202, %v1083, 0
    %1101 = vmatprep.subr.mxu0 0.0
    %1102 = vmatpush1.msra.mxu0 %v1084
    %1103 = vmatprep.subr.mxu0 0.0
    %1104 = vmatpush1.msra.mxu0 %v1085
    %1105 = vmatprep.subr.mxu0 0.0
    %1106 = vmatpush1.msra.mxu0 %v1086
    %1107 = vmatprep.subr.mxu0 0.0
    %1108 = vmatpush1.msra.mxu0 %v1087
    %1109 = vmatprep.subr.mxu0 0.0
    %1110 = vmatpush1.msra.mxu0 0.0
    %1111 = vmatprep.subr.mxu0 0.0
    %1112 = vmatpush1.msra.mxu0 0.0
    %1113 = vmatprep.subr.mxu0 0.0
    %1114 = vmatpush1.msra.mxu0 0.0
    %1115 = vmatprep.subr.mxu0 0.0
    %1116 = vmatpush1.msra.mxu0 0.0
    %1117 = vmatprep.subr.mxu0 0.0
    %1118 = vmatpush1.msra.mxu0 0.0
    %1119 = vmatprep.subr.mxu0 0.0
    %1120 = vmatpush1.msra.mxu0 0.0
    %1121 = vmatprep.subr.mxu0 0.0
    %1122 = vmatpush1.msra.mxu0 0.0
    %1123 = vmatprep.subr.mxu0 0.0
    %1124 = vmatpush1.msra.mxu0 0.0
    %1125 = vmatprep.subr.mxu0 0.0
    %1126 = vmatpush1.msra.mxu0 0.0
    %1127 = vmatprep.subr.mxu0 0.0
    %1128 = vmatpush1.msra.mxu0 0.0
    %1129 = vmatprep.subr.mxu0 0.0
    %1130 = vmatpush1.msra.mxu0 0.0
    %1131 = vmatprep.subr.mxu0 0.0
    %1132 = vmatpush1.msra.mxu0 0.0
    %1133 = vmatprep.subr.mxu0 0.0
    %1134 = vmatpush1.msra.mxu0 0.0
    %1135 = vmatprep.subr.mxu0 0.0
    %1136 = vmatpush1.msra.mxu0 0.0
    %1137 = vmatprep.subr.mxu0 0.0
    %1138 = vmatpush1.msra.mxu0 0.0
    %1139 = vmatprep.subr.mxu0 0.0
    %1140 = vmatpush1.msra.mxu0 0.0
    %1141 = vmatprep.subr.mxu0 0.0
    %1142 = vmatpush1.msra.mxu0 0.0
    %1143 = vmatprep.subr.mxu0 0.0
    %1144 = vmatpush1.msra.mxu0 0.0
    %1145 = vmatprep.subr.mxu0 0.0
    %1146 = vmatpush1.msra.mxu0 0.0
    %1147 = vmatprep.subr.mxu0 0.0
    %1148 = vmatpush1.msra.mxu0 0.0
    %1149 = vmatprep.subr.mxu0 0.0
    %1150 = vmatpush1.msra.mxu0 0.0
    %1151 = vmatprep.subr.mxu0 0.0
    %1152 = vmatpush1.msra.mxu0 0.0
    %1153 = vmatprep.subr.mxu0 0.0
    %1154 = vmatpush1.msra.mxu0 0.0
    %1155 = vmatprep.subr.mxu0 0.0
    %1156 = vmatpush1.msra.mxu0 0.0
    %1157 = vmatprep.subr.mxu0 0.0
    %1158 = vmatpush1.msra.mxu0 0.0
    %1159 = vmatprep.subr.mxu0 0.0
    %1160 = vmatpush1.msra.mxu0 0.0
    %1161 = vmatprep.subr.mxu0 0.0
    %1162 = vmatpush1.msra.mxu0 0.0
    %1163 = vmatprep.subr.mxu0 0.0
    %1164 = vmatpush1.msra.mxu0 0.0
    %1165 = vmatprep.mubr.f32.mxu0 0.0
    %1166 = vmatmul.mubr.f32.gmra.mrb[0].mxu0 %v1096
    %v1167 = vpop.f32.mrb[0].mxu0
    %v1168 = vadd.f32 %v1093, %v1167
    %v1169 = vpop.f32.mrb[0].mxu0
    %1170 = vmatprep.mubr.f32.mxu0 0.0
    %1171 = vmatmul.mubr.f32.gmra.mrb[0].mxu0 %v1099
    %v1172 = vpop.f32.mrb[0].mxu0
    %v1173 = vadd.f32 %v1093, %v1172
    %v1174 = vpop.f32.mrb[0].mxu0
    %1175 = vdwg.mxu0
    %v1176 = vmax.f32 %v1168, 0.0
    %v1177 = vmax.f32 %v1173, 0.0
    %v1178 = vld [vmem:[%s8] sm:$0xff]
    %v1179 = vld [vmem:[%s8 + $0x8] sm:$0xff]
    %v1180 = vld [vmem:[%s8 + $0x10] sm:$0xff]
    %v1181 = vld [vmem:[%s8 + $0x18] sm:$0xff]
    %v1182 = vld [vmem:[%s9] sm:$0x1]
    %v1184 = vlaneseq
    %v1185 = vshrl.u32 %v1184, 7
    %v1186 = vsub.s32 0, %v1185
    %v1187 = vrot.slane %v1182, %v1186
    %v1190 = vsel %vm202, %v1176, 0
    %v1193 = vsel %vm202, %v1177, 0
    %1195 = vmatprep.subr.mxu0 0.0
    %1196 = vmatpush1.msra.mxu0 %v1178
    %1197 = vmatprep.subr.mxu0 0.0
    %1198 = vmatpush1.msra.mxu0 %v1179
    %1199 = vmatprep.subr.mxu0 0.0
    %1200 = vmatpush1.msra.mxu0 %v1180
    %1201 = vmatprep.subr.mxu0 0.0
    %1202 = vmatpush1.msra.mxu0 %v1181
    %1203 = vmatprep.subr.mxu0 0.0
    %1204 = vmatpush1.msra.mxu0 0.0
    %1205 = vmatprep.subr.mxu0 0.0
    %1206 = vmatpush1.msra.mxu0 0.0
    %1207 = vmatprep.subr.mxu0 0.0
    %1208 = vmatpush1.msra.mxu0 0.0
    %1209 = vmatprep.subr.mxu0 0.0
    %1210 = vmatpush1.msra.mxu0 0.0
    %1211 = vmatprep.subr.mxu0 0.0
    %1212 = vmatpush1.msra.mxu0 0.0
    %1213 = vmatprep.subr.mxu0 0.0
    %1214 = vmatpush1.msra.mxu0 0.0
    %1215 = vmatprep.subr.mxu0 0.0
    %1216 = vmatpush1.msra.mxu0 0.0
    %1217 = vmatprep.subr.mxu0 0.0
    %1218 = vmatpush1.msra.mxu0 0.0
    %1219 = vmatprep.subr.mxu0 0.0
    %1220 = vmatpush1.msra.mxu0 0.0
    %1221 = vmatprep.subr.mxu0 0.0
    %1222 = vmatpush1.msra.mxu0 0.0
    %1223 = vmatprep.subr.mxu0 0.0
    %1224 = vmatpush1.msra.mxu0 0.0
    %1225 = vmatprep.subr.mxu0 0.0
    %1226 = vmatpush1.msra.mxu0 0.0
    %1227 = vmatprep.subr.mxu0 0.0
    %1228 = vmatpush1.msra.mxu0 0.0
    %1229 = vmatprep.subr.mxu0 0.0
    %1230 = vmatpush1.msra.mxu0 0.0
    %1231 = vmatprep.subr.mxu0 0.0
    %1232 = vmatpush1.msra.mxu0 0.0
    %1233 = vmatprep.subr.mxu0 0.0
    %1234 = vmatpush1.msra.mxu0 0.0
    %1235 = vmatprep.subr.mxu0 0.0
    %1236 = vmatpush1.msra.mxu0 0.0
    %1237 = vmatprep.subr.mxu0 0.0
    %1238 = vmatpush1.msra.mxu0 0.0
    %1239 = vmatprep.subr.mxu0 0.0
    %1240 = vmatpush1.msra.mxu0 0.0
    %1241 = vmatprep.subr.mxu0 0.0
    %1242 = vmatpush1.msra.mxu0 0.0
    %1243 = vmatprep.subr.mxu0 0.0
    %1244 = vmatpush1.msra.mxu0 0.0
    %1245 = vmatprep.subr.mxu0 0.0
    %1246 = vmatpush1.msra.mxu0 0.0
    %1247 = vmatprep.subr.mxu0 0.0
    %1248 = vmatpush1.msra.mxu0 0.0
    %1249 = vmatprep.subr.mxu0 0.0
    %1250 = vmatpush1.msra.mxu0 0.0
    %1251 = vmatprep.subr.mxu0 0.0
    %1252 = vmatpush1.msra.mxu0 0.0
    %1253 = vmatprep.subr.mxu0 0.0
    %1254 = vmatpush1.msra.mxu0 0.0
    %1255 = vmatprep.subr.mxu0 0.0
    %1256 = vmatpush1.msra.mxu0 0.0
    %1257 = vmatprep.subr.mxu0 0.0
    %1258 = vmatpush1.msra.mxu0 0.0
    %1259 = vmatprep.mubr.f32.mxu0 0.0
    %1260 = vmatmul.mubr.f32.gmra.mrb[0].mxu0 %v1190
    %v1261 = vpop.f32.mrb[0].mxu0
    %v1262 = vadd.f32 %v1187, %v1261
    %v1263 = vpop.f32.mrb[0].mxu0
    %1264 = vmatprep.mubr.f32.mxu0 0.0
    %1265 = vmatmul.mubr.f32.gmra.mrb[0].mxu0 %v1193
    %v1266 = vpop.f32.mrb[0].mxu0
    %v1267 = vadd.f32 %v1187, %v1266
    %v1268 = vpop.f32.mrb[0].mxu0
    %1269 = vdwg.mxu0
    %vm1270 = vcmask 130048
    %1271 = vst.msk [vmem:[#allocation12] sm:$0xff] %vm1270, %v1262
    %1272 = vst.msk [vmem:[#allocation12 + $0x8] sm:$0xff] %vm1270, %v1267
    %1273 = vst.msk [vmem:[#allocation13 - $0x6] sm:$0xc0] %vm642, %v1079
    %1275 = vrot.lane.b32.xlu0 %v1070, 96
    %v1276 = vpop.permute.xlu0 %1275
    %1278 = vst.msk [vmem:[#allocation15 - $0x6] sm:$0xc0] %vm642, %v1276
    // Predicated region
    $region62: #{encoder_forward.1} parent=1 // pred_check
      _
    $region63: #{encoder_forward.1} parent=1 // pred_check_branch
      %1280 = sbr.rel (0) target = $region65
    $region64: #{encoder_forward.1} parent=1 // pred_region
      %s1282 = ssub.s32 256, 256
      %1283 = vsyncadd [#allocation5], %s1282
      %s1284 = sshll.u32 [#allocation12], 4
      %s1285 = int_to_ptr.vmem [resolvable:$true] %s1284
      %1290 = dma.vmem_to_hbm [thread:$0]  %s1285, 256, %s10, [#allocation5], 128, 128, 8
    $region65: #{encoder_forward.1} parent=1 // pred_fallthru
      _
    // Predicated region
    $region66: #{encoder_forward.1} parent=1 // pred_check
      _
    $region67: #{encoder_forward.1} parent=1 // pred_check_branch
      %1292 = sbr.rel (0) target = $region69
    $region68: #{encoder_forward.1} parent=1 // pred_region
      %s1294 = ssub.s32 32, 32
      %1295 = vsyncadd [#allocation14], %s1294
      %s1297 = sshll.u32 [#allocation13], 4
      %s1298 = int_to_ptr.vmem [resolvable:$true] %s1297
      %1300 = dma.vmem_to_hbm [thread:$0]  %s1298, 32, %s11, [#allocation14]
    $region69: #{encoder_forward.1} parent=1 // pred_fallthru
      _
    // Predicated region
    $region70: #{encoder_forward.1} parent=1 // pred_check
      _
    $region71: #{encoder_forward.1} parent=1 // pred_check_branch
      %1302 = sbr.rel (0) target = $region73
    $region72: #{encoder_forward.1} parent=1 // pred_region
      %s1304 = ssub.s32 32, 32
      %1305 = vsyncadd [#allocation14], %s1304
      %s1307 = sshll.u32 [#allocation15], 4
      %s1308 = int_to_ptr.vmem [resolvable:$true] %s1307
      %1310 = dma.vmem_to_hbm [thread:$0]  %s1308, 32, %s12, [#allocation14]
    $region73: #{encoder_forward.1} parent=1 // pred_fallthru
      _
    // Predicated region
    $region74: #{encoder_forward.1} parent=1 // pred_check
      _
    $region75: #{encoder_forward.1} parent=1 // pred_check_branch
      %1312 = sbr.rel (0) target = $region77
    $region76: #{encoder_forward.1} parent=1 // pred_region
      %1313 = dma.done [#allocation5], 256
    $region77: #{encoder_forward.1} parent=1 // pred_fallthru
      _
    // Predicated region
    $region78: #{encoder_forward.1} parent=1 // pred_check
      _
    $region79: #{encoder_forward.1} parent=1 // pred_check_branch
      %1315 = sbr.rel (0) target = $region81
    $region80: #{encoder_forward.1} parent=1 // pred_region
      %1316 = dma.done [#allocation14], 32
    $region81: #{encoder_forward.1} parent=1 // pred_fallthru
      _
    // Predicated region
    $region82: #{encoder_forward.1} parent=1 // pred_check
      _
    $region83: #{encoder_forward.1} parent=1 // pred_check_branch
      %1318 = sbr.rel (0) target = $region85
    $region84: #{encoder_forward.1} parent=1 // pred_region
      %1319 = dma.done [#allocation14], 32
    $region85: #{encoder_forward.1} parent=1 // pred_fallthru
      _
    %1320 = vsyncpa [#allocation4], 1
    %1321 = vsyncpa [#allocation7], 1
    %1322 = vsyncpa [#allocation10], 1
    %1323 = vsyncpa [#allocation5], 1
    %1324 = vsyncpa [#allocation14], 1

</llo_original>
